<compile_context>
chip_gen: v5e
topology: v5e:2x2
jax: 0.10.0
libtpu: 0.0.40
codegen_flags: <defaults>
</compile_context>

<pallas_src>
import functools

import jax
import jax.numpy as jnp
from jax.experimental import pallas as pl
from jax.experimental.pallas import tpu as pltpu


def deeplog_kernel(xproj_ref, whh0_ref, wih_ref, whh_ref, b_ref,
                   fcw_ref, fcb_ref, out_ref, *, seq_len, num_layers):
    """All refs are whole-array VMEM blocks (everything fits trivially).

    xproj_ref : (T*B, 4H)  embedding + layer-0 input projection + combined bias (g-lanes x2)
    whh0_ref  : (H, 4H)    layer-0 recurrent weights (g-lanes x2)
    wih_ref   : (L-1, H, 4H)  layers>=1 input weights   (g-lanes x2)  [dummy if L==1]
    whh_ref   : (L-1, H, 4H)  layers>=1 recurrent weights (g-lanes x2)
    b_ref     : (L-1, 1, 4H)  layers>=1 combined biases  (g-lanes x2)
    fcw_ref   : (H, C), fcb_ref : (1, C), out_ref : (B, C)
    """
    T = seq_len
    L = num_layers
    B = out_ref.shape[0]
    H = whh0_ref.shape[0]
    H4 = whh0_ref.shape[1]

    # ---- loop-invariant loads / broadcasts, hoisted once ----
    whh0 = whh0_ref[...]                                           # (H, 4H)
    wih_l = [wih_ref[l - 1] for l in range(1, L)]                  # each (H, 4H)
    whh_l = [whh_ref[l - 1] for l in range(1, L)]                  # each (H, 4H)
    b_bc = [jnp.broadcast_to(b_ref[l - 1], (B, H4)) for l in range(1, L)]

    def cell(gates, c_prev):
        # One full-(B,4H) sigmoid; g-gate pre-activations were pre-scaled by 2 in the wrapper,
        # so tanh(x) == 2*sigmoid(2x) - 1 is recovered with a cheap VPU fma on the g slice.
        sig = jax.nn.sigmoid(gates)
        i_g = sig[:, 0 * H:1 * H]
        f_g = sig[:, 1 * H:2 * H]
        g_g = 2.0 * sig[:, 2 * H:3 * H] - 1.0
        o_g = sig[:, 3 * H:4 * H]
        c_new = f_g * c_prev + i_g * g_g
        h_new = o_g * jnp.tanh(c_new)
        return h_new, c_new

    # h0 = c0 = zeros (matches torch.zeros in forward()).
    h = [jnp.zeros((B, H), jnp.float32) for _ in range(L)]
    c = [jnp.zeros((B, H), jnp.float32) for _ in range(L)]

    # Pre-issued recurrent halves of the gate pre-activations.
    # With h == 0: layer 0 -> 0 (bias already folded into xproj); layers>=1 -> just the bias.
    gates_h0 = jnp.zeros((B, H4), jnp.float32)
    gates_h = [b_bc[i] for i in range(L - 1)]

    # Fully unrolled time loop (T, L small & static) -> cross-iteration scheduling visibility.
    for t in range(T):
        # ---- layer 0: input projection precomputed; only the pre-issued h@Whh add remains ----
        gates0 = xproj_ref[t * B:(t + 1) * B, :] + gates_h0
        h[0], c[0] = cell(gates0, c[0])
        if t + 1 < T:  # pre-issue layer-0 recurrent matmul for step t+1 (skip dead last one)
            gates_h0 = jnp.dot(h[0], whh0, preferred_element_type=jnp.float32)
        inp = h[0]

        # ---- layers >= 1: only inp @ Wih + one add on the serial chain ----
        for l in range(1, L):
            gates = jnp.dot(inp, wih_l[l - 1],
                            preferred_element_type=jnp.float32) + gates_h[l - 1]
            h[l], c[l] = cell(gates, c[l])
            if t + 1 < T:  # pre-issue h@Whh + bias for step t+1 as soon as h[l] is ready
                gates_h[l - 1] = jnp.dot(h[l], whh_l[l - 1],
                                         preferred_element_type=jnp.float32) + b_bc[l - 1]
            inp = h[l]

    # fc on the last-timestep hidden state of the top layer
    out_ref[...] = (jnp.dot(h[L - 1], fcw_ref[...],
                            preferred_element_type=jnp.float32) + fcb_ref[...])


@jax.jit
def deeplog_forward(tokens, params):
    """tokens: (B, T) int32 ; returns logits (B, num_classes) f32."""
    B, T = tokens.shape
    L, E, H4 = params["wih"].shape
    H = H4 // 4
    C = params["fcw"].shape[1]

    # g-gate lane scaling (x2) so the kernel can use the sigmoid-only tanh trick.
    gscale = jnp.concatenate([jnp.ones((2 * H,), jnp.float32),
                              jnp.full((H,), 2.0, jnp.float32),
                              jnp.ones((H,), jnp.float32)])       # (4H,)

    # --- fused embedding + layer-0 input projection: (num_classes, 4H) table, then a gather ---
    # Exact algebraic fusion: emb@Wih0 + b0 == take(embedding@Wih0 + b0, tokens).
    proj_table = (params["embedding"] @ params["wih"][0]
                  + params["bih"][0] + params["bhh"][0]) * gscale  # (num_classes, 4H)
    tokens_tb = jnp.transpose(tokens, (1, 0)).reshape(T * B)       # row t*B + b == (t, b)
    xproj = jnp.take(proj_table, tokens_tb, axis=0)                # (T*B, 4H)  gather = glue

    whh0 = params["whh"][0] * gscale                               # (H, 4H)
    if L > 1:
        wih_rest = params["wih"][1:] * gscale                      # (L-1, H, 4H)
        whh_rest = params["whh"][1:] * gscale                      # (L-1, H, 4H)
        b_rest = (params["bih"][1:] + params["bhh"][1:]) * gscale  # (L-1, 1, 4H)
    else:
        wih_rest = jnp.zeros((1, H, H4), jnp.float32)              # unused dummies
        whh_rest = jnp.zeros((1, H, H4), jnp.float32)
        b_rest = jnp.zeros((1, 1, H4), jnp.float32)

    flops = 2 * B * H * H4 * (T * (2 * L - 1)) + 2 * B * H * C
    transcendentals = T * L * B * (H4 + H)
    bytes_accessed = 4 * (xproj.size + whh0.size + wih_rest.size + whh_rest.size
                          + b_rest.size + params["fcw"].size + params["fcb"].size + B * C)

    vmem = pl.BlockSpec(memory_space=pltpu.MemorySpace.VMEM)
    kernel = functools.partial(deeplog_kernel, seq_len=T, num_layers=L)
    return pl.pallas_call(
        kernel,
        out_shape=jax.ShapeDtypeStruct((B, C), jnp.float32),
        in_specs=[vmem] * 7,
        out_specs=vmem,
        cost_estimate=pl.CostEstimate(flops=flops,
                                      transcendentals=transcendentals,
                                      bytes_accessed=bytes_accessed),
    )(xproj, whh0, wih_rest, whh_rest, b_rest, params["fcw"], params["fcb"])


def init_params(key, num_classes, embedding_dim, hidden_size, num_layers):
    # NOTE: stacked layers require embedding_dim == hidden_size for this packed layout
    # (true for the shapes used here; the general case would pass layer-0 separately).
    assert embedding_dim == hidden_size
    ks = jax.random.split(key, 7)
    scale = 0.1
    return {
        "embedding": scale * jax.random.normal(ks[0], (num_classes, embedding_dim), jnp.float32),
        "wih": scale * jax.random.normal(ks[1], (num_layers, embedding_dim, 4 * hidden_size), jnp.float32),
        "whh": scale * jax.random.normal(ks[2], (num_layers, hidden_size, 4 * hidden_size), jnp.float32),
        "bih": scale * jax.random.normal(ks[3], (num_layers, 1, 4 * hidden_size), jnp.float32),
        "bhh": scale * jax.random.normal(ks[4], (num_layers, 1, 4 * hidden_size), jnp.float32),
        "fcw": scale * jax.random.normal(ks[5], (hidden_size, num_classes), jnp.float32),
        "fcb": scale * jax.random.normal(ks[6], (1, num_classes), jnp.float32),
    }


def deeplog_reference(tokens, params):
    """Pure-JAX reference matching PyTorch nn.LSTM (gate order i,f,g,o)."""
    emb = jnp.take(params["embedding"], tokens, axis=0)  # (B, T, E)
    B, T, E = emb.shape
    L, _, H4 = params["wih"].shape
    H = H4 // 4
    h = jnp.zeros((L, B, H), jnp.float32)
    c = jnp.zeros((L, B, H), jnp.float32)
    for t in range(T):
        inp = emb[:, t, :]
        for l in range(L):
            gates = (inp @ params["wih"][l] + h[l] @ params["whh"][l]
                     + params["bih"][l] + params["bhh"][l])
            i_g = jax.nn.sigmoid(gates[:, 0 * H:1 * H])
            f_g = jax.nn.sigmoid(gates[:, 1 * H:2 * H])
            g_g = jnp.tanh(gates[:, 2 * H:3 * H])
            o_g = jax.nn.sigmoid(gates[:, 3 * H:4 * H])
            c_new = f_g * c[l] + i_g * g_g
            h_new = o_g * jnp.tanh(c_new)
            h = h.at[l].set(h_new)
            c = c.at[l].set(c_new)
            inp = h_new
    return h[L - 1] @ params["fcw"] + params["fcb"]


if __name__ == "__main__":
    num_classes = 32
    embedding_dim = 32
    hidden_size = 32   # 4H = 128 -> lane-perfect
    num_layers = 2
    batch = 8          # sublane-perfect
    seq_len = 8

    key = jax.random.PRNGKey(0)
    k_param, k_tok = jax.random.split(key)
    params = init_params(k_param, num_classes, embedding_dim, hidden_size, num_layers)
    tokens = jax.random.randint(k_tok, (batch, seq_len), 0, num_classes, dtype=jnp.int32)

    out = jax.block_until_ready(deeplog_forward(tokens, params))
    assert out.shape == (batch, num_classes)

    ref = deeplog_reference(tokens, params)
    assert jnp.allclose(out, ref, atol=2e-2, rtol=2e-2), "kernel/reference mismatch"

    print("KERNEL_OK")
</pallas_src>

<mosaic_0001>
module attributes {stable_mosaic.version = 11 : i64} {
  func.func @deeplog_kernel(%arg0: memref<64x128xf32, #tpu.memory_space<vmem>>, %arg1: memref<32x128xf32, #tpu.memory_space<vmem>>, %arg2: memref<1x32x128xf32, #tpu.memory_space<vmem>>, %arg3: memref<1x32x128xf32, #tpu.memory_space<vmem>>, %arg4: memref<1x1x128xf32, #tpu.memory_space<vmem>>, %arg5: memref<32x32xf32, #tpu.memory_space<vmem>>, %arg6: memref<1x32xf32, #tpu.memory_space<vmem>>, %arg7: memref<8x32xf32, #tpu.memory_space<vmem>>) attributes {dimension_semantics = [], scalar_prefetch = 0 : i64, scratch_operands = 0 : i64, tpu.core_type = #tpu.core_type<tc>} {
    %c0 = arith.constant 0 : index
    %c0_0 = arith.constant 0 : index
    %0 = vector.load %arg1[%c0, %c0_0] : memref<32x128xf32, #tpu.memory_space<vmem>>, vector<32x128xf32>
    %c0_1 = arith.constant 0 : index
    %c0_2 = arith.constant 0 : index
    %c0_3 = arith.constant 0 : index
    %1 = vector.load %arg2[%c0_1, %c0_2, %c0_3] : memref<1x32x128xf32, #tpu.memory_space<vmem>>, vector<1x32x128xf32>
    %2 = vector.shape_cast %1 : vector<1x32x128xf32> to vector<32x128xf32>
    %c0_4 = arith.constant 0 : index
    %c0_5 = arith.constant 0 : index
    %c0_6 = arith.constant 0 : index
    %3 = vector.load %arg3[%c0_4, %c0_5, %c0_6] : memref<1x32x128xf32, #tpu.memory_space<vmem>>, vector<1x32x128xf32>
    %4 = vector.shape_cast %3 : vector<1x32x128xf32> to vector<32x128xf32>
    %c0_7 = arith.constant 0 : index
    %c0_8 = arith.constant 0 : index
    %c0_9 = arith.constant 0 : index
    %5 = vector.load %arg4[%c0_7, %c0_8, %c0_9] : memref<1x1x128xf32, #tpu.memory_space<vmem>>, vector<1x1x128xf32>
    %6 = vector.shape_cast %5 : vector<1x1x128xf32> to vector<1x128xf32>
    %7 = vector.shape_cast %6 : vector<1x128xf32> to vector<1x128xf32>
    %8 = vector.broadcast %7 : vector<1x128xf32> to vector<8x128xf32>
    %cst = arith.constant 0.000000e+00 : f32
    %9 = vector.broadcast %cst : f32 to vector<8x32xf32>
    %cst_10 = arith.constant 0.000000e+00 : f32
    %10 = vector.broadcast %cst_10 : f32 to vector<8x32xf32>
    %cst_11 = arith.constant 0.000000e+00 : f32
    %11 = vector.broadcast %cst_11 : f32 to vector<8x128xf32>
    %c0_12 = arith.constant 0 : index
    %c0_13 = arith.constant 0 : index
    %12 = vector.load %arg0[%c0_12, %c0_13] : memref<64x128xf32, #tpu.memory_space<vmem>>, vector<8x128xf32>
    %13 = arith.addf %12, %11 : vector<8x128xf32>
    %14 = arith.negf %13 : vector<8x128xf32>
    %15 = math.exp %14 : vector<8x128xf32>
    %cst_14 = arith.constant 1.000000e+00 : f32
    %16 = vector.broadcast %cst_14 : f32 to vector<8x128xf32>
    %17 = arith.addf %16, %15 : vector<8x128xf32>
    %18 = arith.divf %16, %17 : vector<8x128xf32>
    %19 = vector.extract_strided_slice %18 {offsets = [0, 0], sizes = [8, 32], strides = [1, 1]} : vector<8x128xf32> to vector<8x32xf32>
    %20 = vector.extract_strided_slice %18 {offsets = [0, 32], sizes = [8, 32], strides = [1, 1]} : vector<8x128xf32> to vector<8x32xf32>
    %21 = vector.extract_strided_slice %18 {offsets = [0, 64], sizes = [8, 32], strides = [1, 1]} : vector<8x128xf32> to vector<8x32xf32>
    %cst_15 = arith.constant 2.000000e+00 : f32
    %22 = vector.broadcast %cst_15 : f32 to vector<8x32xf32>
    %23 = arith.mulf %22, %21 : vector<8x32xf32>
    %cst_16 = arith.constant 1.000000e+00 : f32
    %24 = vector.broadcast %cst_16 : f32 to vector<8x32xf32>
    %25 = arith.subf %23, %24 : vector<8x32xf32>
    %26 = vector.extract_strided_slice %18 {offsets = [0, 96], sizes = [8, 32], strides = [1, 1]} : vector<8x128xf32> to vector<8x32xf32>
    %27 = arith.mulf %20, %9 : vector<8x32xf32>
    %28 = arith.mulf %19, %25 : vector<8x32xf32>
    %29 = arith.addf %27, %28 : vector<8x32xf32>
    %30 = math.tanh %29 : vector<8x32xf32>
    %31 = arith.mulf %26, %30 : vector<8x32xf32>
    %cst_17 = arith.constant dense<0.000000e+00> : vector<8x128xf32>
    %32 = tpu.matmul %31, %0, %cst_17 {dimension_numbers = #tpu.dot_dimension_numbers<[1], [0], [0], [1], [0, 0, 1, 1], [], []>} : vector<8x32xf32>, vector<32x128xf32>, vector<8x128xf32> -> vector<8x128xf32>
    %cst_18 = arith.constant dense<0.000000e+00> : vector<8x128xf32>
    %33 = tpu.matmul %31, %2, %cst_18 {dimension_numbers = #tpu.dot_dimension_numbers<[1], [0], [0], [1], [0, 0, 1, 1], [], []>} : vector<8x32xf32>, vector<32x128xf32>, vector<8x128xf32> -> vector<8x128xf32>
    %34 = arith.addf %33, %8 : vector<8x128xf32>
    %35 = arith.negf %34 : vector<8x128xf32>
    %36 = math.exp %35 : vector<8x128xf32>
    %cst_19 = arith.constant 1.000000e+00 : f32
    %37 = vector.broadcast %cst_19 : f32 to vector<8x128xf32>
    %38 = arith.addf %37, %36 : vector<8x128xf32>
    %39 = arith.divf %37, %38 : vector<8x128xf32>
    %40 = vector.extract_strided_slice %39 {offsets = [0, 0], sizes = [8, 32], strides = [1, 1]} : vector<8x128xf32> to vector<8x32xf32>
    %41 = vector.extract_strided_slice %39 {offsets = [0, 32], sizes = [8, 32], strides = [1, 1]} : vector<8x128xf32> to vector<8x32xf32>
    %42 = vector.extract_strided_slice %39 {offsets = [0, 64], sizes = [8, 32], strides = [1, 1]} : vector<8x128xf32> to vector<8x32xf32>
    %cst_20 = arith.constant 2.000000e+00 : f32
    %43 = vector.broadcast %cst_20 : f32 to vector<8x32xf32>
    %44 = arith.mulf %43, %42 : vector<8x32xf32>
    %cst_21 = arith.constant 1.000000e+00 : f32
    %45 = vector.broadcast %cst_21 : f32 to vector<8x32xf32>
    %46 = arith.subf %44, %45 : vector<8x32xf32>
    %47 = vector.extract_strided_slice %39 {offsets = [0, 96], sizes = [8, 32], strides = [1, 1]} : vector<8x128xf32> to vector<8x32xf32>
    %48 = arith.mulf %41, %10 : vector<8x32xf32>
    %49 = arith.mulf %40, %46 : vector<8x32xf32>
    %50 = arith.addf %48, %49 : vector<8x32xf32>
    %51 = math.tanh %50 : vector<8x32xf32>
    %52 = arith.mulf %47, %51 : vector<8x32xf32>
    %cst_22 = arith.constant dense<0.000000e+00> : vector<8x128xf32>
    %53 = tpu.matmul %52, %4, %cst_22 {dimension_numbers = #tpu.dot_dimension_numbers<[1], [0], [0], [1], [0, 0, 1, 1], [], []>} : vector<8x32xf32>, vector<32x128xf32>, vector<8x128xf32> -> vector<8x128xf32>
    %54 = arith.addf %53, %8 : vector<8x128xf32>
    %c8 = arith.constant 8 : index
    %c0_23 = arith.constant 0 : index
    %55 = vector.load %arg0[%c8, %c0_23] : memref<64x128xf32, #tpu.memory_space<vmem>>, vector<8x128xf32>
    %56 = arith.addf %55, %32 : vector<8x128xf32>
    %57 = arith.negf %56 : vector<8x128xf32>
    %58 = math.exp %57 : vector<8x128xf32>
    %cst_24 = arith.constant 1.000000e+00 : f32
    %59 = vector.broadcast %cst_24 : f32 to vector<8x128xf32>
    %60 = arith.addf %59, %58 : vector<8x128xf32>
    %61 = arith.divf %59, %60 : vector<8x128xf32>
    %62 = vector.extract_strided_slice %61 {offsets = [0, 0], sizes = [8, 32], strides = [1, 1]} : vector<8x128xf32> to vector<8x32xf32>
    %63 = vector.extract_strided_slice %61 {offsets = [0, 32], sizes = [8, 32], strides = [1, 1]} : vector<8x128xf32> to vector<8x32xf32>
    %64 = vector.extract_strided_slice %61 {offsets = [0, 64], sizes = [8, 32], strides = [1, 1]} : vector<8x128xf32> to vector<8x32xf32>
    %cst_25 = arith.constant 2.000000e+00 : f32
    %65 = vector.broadcast %cst_25 : f32 to vector<8x32xf32>
    %66 = arith.mulf %65, %64 : vector<8x32xf32>
    %cst_26 = arith.constant 1.000000e+00 : f32
    %67 = vector.broadcast %cst_26 : f32 to vector<8x32xf32>
    %68 = arith.subf %66, %67 : vector<8x32xf32>
    %69 = vector.extract_strided_slice %61 {offsets = [0, 96], sizes = [8, 32], strides = [1, 1]} : vector<8x128xf32> to vector<8x32xf32>
    %70 = arith.mulf %63, %29 : vector<8x32xf32>
    %71 = arith.mulf %62, %68 : vector<8x32xf32>
    %72 = arith.addf %70, %71 : vector<8x32xf32>
    %73 = math.tanh %72 : vector<8x32xf32>
    %74 = arith.mulf %69, %73 : vector<8x32xf32>
    %cst_27 = arith.constant dense<0.000000e+00> : vector<8x128xf32>
    %75 = tpu.matmul %74, %0, %cst_27 {dimension_numbers = #tpu.dot_dimension_numbers<[1], [0], [0], [1], [0, 0, 1, 1], [], []>} : vector<8x32xf32>, vector<32x128xf32>, vector<8x128xf32> -> vector<8x128xf32>
    %cst_28 = arith.constant dense<0.000000e+00> : vector<8x128xf32>
    %76 = tpu.matmul %74, %2, %cst_28 {dimension_numbers = #tpu.dot_dimension_numbers<[1], [0], [0], [1], [0, 0, 1, 1], [], []>} : vector<8x32xf32>, vector<32x128xf32>, vector<8x128xf32> -> vector<8x128xf32>
    %77 = arith.addf %76, %54 : vector<8x128xf32>
    %78 = arith.negf %77 : vector<8x128xf32>
    %79 = math.exp %78 : vector<8x128xf32>
    %cst_29 = arith.constant 1.000000e+00 : f32
    %80 = vector.broadcast %cst_29 : f32 to vector<8x128xf32>
    %81 = arith.addf %80, %79 : vector<8x128xf32>
    %82 = arith.divf %80, %81 : vector<8x128xf32>
    %83 = vector.extract_strided_slice %82 {offsets = [0, 0], sizes = [8, 32], strides = [1, 1]} : vector<8x128xf32> to vector<8x32xf32>
    %84 = vector.extract_strided_slice %82 {offsets = [0, 32], sizes = [8, 32], strides = [1, 1]} : vector<8x128xf32> to vector<8x32xf32>
    %85 = vector.extract_strided_slice %82 {offsets = [0, 64], sizes = [8, 32], strides = [1, 1]} : vector<8x128xf32> to vector<8x32xf32>
    %cst_30 = arith.constant 2.000000e+00 : f32
    %86 = vector.broadcast %cst_30 : f32 to vector<8x32xf32>
    %87 = arith.mulf %86, %85 : vector<8x32xf32>
    %cst_31 = arith.constant 1.000000e+00 : f32
    %88 = vector.broadcast %cst_31 : f32 to vector<8x32xf32>
    %89 = arith.subf %87, %88 : vector<8x32xf32>
    %90 = vector.extract_strided_slice %82 {offsets = [0, 96], sizes = [8, 32], strides = [1, 1]} : vector<8x128xf32> to vector<8x32xf32>
    %91 = arith.mulf %84, %50 : vector<8x32xf32>
    %92 = arith.mulf %83, %89 : vector<8x32xf32>
    %93 = arith.addf %91, %92 : vector<8x32xf32>
    %94 = math.tanh %93 : vector<8x32xf32>
    %95 = arith.mulf %90, %94 : vector<8x32xf32>
    %cst_32 = arith.constant dense<0.000000e+00> : vector<8x128xf32>
    %96 = tpu.matmul %95, %4, %cst_32 {dimension_numbers = #tpu.dot_dimension_numbers<[1], [0], [0], [1], [0, 0, 1, 1], [], []>} : vector<8x32xf32>, vector<32x128xf32>, vector<8x128xf32> -> vector<8x128xf32>
    %97 = arith.addf %96, %8 : vector<8x128xf32>
    %c16 = arith.constant 16 : index
    %c0_33 = arith.constant 0 : index
    %98 = vector.load %arg0[%c16, %c0_33] : memref<64x128xf32, #tpu.memory_space<vmem>>, vector<8x128xf32>
    %99 = arith.addf %98, %75 : vector<8x128xf32>
    %100 = arith.negf %99 : vector<8x128xf32>
    %101 = math.exp %100 : vector<8x128xf32>
    %cst_34 = arith.constant 1.000000e+00 : f32
    %102 = vector.broadcast %cst_34 : f32 to vector<8x128xf32>
    %103 = arith.addf %102, %101 : vector<8x128xf32>
    %104 = arith.divf %102, %103 : vector<8x128xf32>
    %105 = vector.extract_strided_slice %104 {offsets = [0, 0], sizes = [8, 32], strides = [1, 1]} : vector<8x128xf32> to vector<8x32xf32>
    %106 = vector.extract_strided_slice %104 {offsets = [0, 32], sizes = [8, 32], strides = [1, 1]} : vector<8x128xf32> to vector<8x32xf32>
    %107 = vector.extract_strided_slice %104 {offsets = [0, 64], sizes = [8, 32], strides = [1, 1]} : vector<8x128xf32> to vector<8x32xf32>
    %cst_35 = arith.constant 2.000000e+00 : f32
    %108 = vector.broadcast %cst_35 : f32 to vector<8x32xf32>
    %109 = arith.mulf %108, %107 : vector<8x32xf32>
    %cst_36 = arith.constant 1.000000e+00 : f32
    %110 = vector.broadcast %cst_36 : f32 to vector<8x32xf32>
    %111 = arith.subf %109, %110 : vector<8x32xf32>
    %112 = vector.extract_strided_slice %104 {offsets = [0, 96], sizes = [8, 32], strides = [1, 1]} : vector<8x128xf32> to vector<8x32xf32>
    %113 = arith.mulf %106, %72 : vector<8x32xf32>
    %114 = arith.mulf %105, %111 : vector<8x32xf32>
    %115 = arith.addf %113, %114 : vector<8x32xf32>
    %116 = math.tanh %115 : vector<8x32xf32>
    %117 = arith.mulf %112, %116 : vector<8x32xf32>
    %cst_37 = arith.constant dense<0.000000e+00> : vector<8x128xf32>
    %118 = tpu.matmul %117, %0, %cst_37 {dimension_numbers = #tpu.dot_dimension_numbers<[1], [0], [0], [1], [0, 0, 1, 1], [], []>} : vector<8x32xf32>, vector<32x128xf32>, vector<8x128xf32> -> vector<8x128xf32>
    %cst_38 = arith.constant dense<0.000000e+00> : vector<8x128xf32>
    %119 = tpu.matmul %117, %2, %cst_38 {dimension_numbers = #tpu.dot_dimension_numbers<[1], [0], [0], [1], [0, 0, 1, 1], [], []>} : vector<8x32xf32>, vector<32x128xf32>, vector<8x128xf32> -> vector<8x128xf32>
    %120 = arith.addf %119, %97 : vector<8x128xf32>
    %121 = arith.negf %120 : vector<8x128xf32>
    %122 = math.exp %121 : vector<8x128xf32>
    %cst_39 = arith.constant 1.000000e+00 : f32
    %123 = vector.broadcast %cst_39 : f32 to vector<8x128xf32>
    %124 = arith.addf %123, %122 : vector<8x128xf32>
    %125 = arith.divf %123, %124 : vector<8x128xf32>
    %126 = vector.extract_strided_slice %125 {offsets = [0, 0], sizes = [8, 32], strides = [1, 1]} : vector<8x128xf32> to vector<8x32xf32>
    %127 = vector.extract_strided_slice %125 {offsets = [0, 32], sizes = [8, 32], strides = [1, 1]} : vector<8x128xf32> to vector<8x32xf32>
    %128 = vector.extract_strided_slice %125 {offsets = [0, 64], sizes = [8, 32], strides = [1, 1]} : vector<8x128xf32> to vector<8x32xf32>
    %cst_40 = arith.constant 2.000000e+00 : f32
    %129 = vector.broadcast %cst_40 : f32 to vector<8x32xf32>
    %130 = arith.mulf %129, %128 : vector<8x32xf32>
    %cst_41 = arith.constant 1.000000e+00 : f32
    %131 = vector.broadcast %cst_41 : f32 to vector<8x32xf32>
    %132 = arith.subf %130, %131 : vector<8x32xf32>
    %133 = vector.extract_strided_slice %125 {offsets = [0, 96], sizes = [8, 32], strides = [1, 1]} : vector<8x128xf32> to vector<8x32xf32>
    %134 = arith.mulf %127, %93 : vector<8x32xf32>
    %135 = arith.mulf %126, %132 : vector<8x32xf32>
    %136 = arith.addf %134, %135 : vector<8x32xf32>
    %137 = math.tanh %136 : vector<8x32xf32>
    %138 = arith.mulf %133, %137 : vector<8x32xf32>
    %cst_42 = arith.constant dense<0.000000e+00> : vector<8x128xf32>
    %139 = tpu.matmul %138, %4, %cst_42 {dimension_numbers = #tpu.dot_dimension_numbers<[1], [0], [0], [1], [0, 0, 1, 1], [], []>} : vector<8x32xf32>, vector<32x128xf32>, vector<8x128xf32> -> vector<8x128xf32>
    %140 = arith.addf %139, %8 : vector<8x128xf32>
    %c24 = arith.constant 24 : index
    %c0_43 = arith.constant 0 : index
    %141 = vector.load %arg0[%c24, %c0_43] : memref<64x128xf32, #tpu.memory_space<vmem>>, vector<8x128xf32>
    %142 = arith.addf %141, %118 : vector<8x128xf32>
    %143 = arith.negf %142 : vector<8x128xf32>
    %144 = math.exp %143 : vector<8x128xf32>
    %cst_44 = arith.constant 1.000000e+00 : f32
    %145 = vector.broadcast %cst_44 : f32 to vector<8x128xf32>
    %146 = arith.addf %145, %144 : vector<8x128xf32>
    %147 = arith.divf %145, %146 : vector<8x128xf32>
    %148 = vector.extract_strided_slice %147 {offsets = [0, 0], sizes = [8, 32], strides = [1, 1]} : vector<8x128xf32> to vector<8x32xf32>
    %149 = vector.extract_strided_slice %147 {offsets = [0, 32], sizes = [8, 32], strides = [1, 1]} : vector<8x128xf32> to vector<8x32xf32>
    %150 = vector.extract_strided_slice %147 {offsets = [0, 64], sizes = [8, 32], strides = [1, 1]} : vector<8x128xf32> to vector<8x32xf32>
    %cst_45 = arith.constant 2.000000e+00 : f32
    %151 = vector.broadcast %cst_45 : f32 to vector<8x32xf32>
    %152 = arith.mulf %151, %150 : vector<8x32xf32>
    %cst_46 = arith.constant 1.000000e+00 : f32
    %153 = vector.broadcast %cst_46 : f32 to vector<8x32xf32>
    %154 = arith.subf %152, %153 : vector<8x32xf32>
    %155 = vector.extract_strided_slice %147 {offsets = [0, 96], sizes = [8, 32], strides = [1, 1]} : vector<8x128xf32> to vector<8x32xf32>
    %156 = arith.mulf %149, %115 : vector<8x32xf32>
    %157 = arith.mulf %148, %154 : vector<8x32xf32>
    %158 = arith.addf %156, %157 : vector<8x32xf32>
    %159 = math.tanh %158 : vector<8x32xf32>
    %160 = arith.mulf %155, %159 : vector<8x32xf32>
    %cst_47 = arith.constant dense<0.000000e+00> : vector<8x128xf32>
    %161 = tpu.matmul %160, %0, %cst_47 {dimension_numbers = #tpu.dot_dimension_numbers<[1], [0], [0], [1], [0, 0, 1, 1], [], []>} : vector<8x32xf32>, vector<32x128xf32>, vector<8x128xf32> -> vector<8x128xf32>
    %cst_48 = arith.constant dense<0.000000e+00> : vector<8x128xf32>
    %162 = tpu.matmul %160, %2, %cst_48 {dimension_numbers = #tpu.dot_dimension_numbers<[1], [0], [0], [1], [0, 0, 1, 1], [], []>} : vector<8x32xf32>, vector<32x128xf32>, vector<8x128xf32> -> vector<8x128xf32>
    %163 = arith.addf %162, %140 : vector<8x128xf32>
    %164 = arith.negf %163 : vector<8x128xf32>
    %165 = math.exp %164 : vector<8x128xf32>
    %cst_49 = arith.constant 1.000000e+00 : f32
    %166 = vector.broadcast %cst_49 : f32 to vector<8x128xf32>
    %167 = arith.addf %166, %165 : vector<8x128xf32>
    %168 = arith.divf %166, %167 : vector<8x128xf32>
    %169 = vector.extract_strided_slice %168 {offsets = [0, 0], sizes = [8, 32], strides = [1, 1]} : vector<8x128xf32> to vector<8x32xf32>
    %170 = vector.extract_strided_slice %168 {offsets = [0, 32], sizes = [8, 32], strides = [1, 1]} : vector<8x128xf32> to vector<8x32xf32>
    %171 = vector.extract_strided_slice %168 {offsets = [0, 64], sizes = [8, 32], strides = [1, 1]} : vector<8x128xf32> to vector<8x32xf32>
    %cst_50 = arith.constant 2.000000e+00 : f32
    %172 = vector.broadcast %cst_50 : f32 to vector<8x32xf32>
    %173 = arith.mulf %172, %171 : vector<8x32xf32>
    %cst_51 = arith.constant 1.000000e+00 : f32
    %174 = vector.broadcast %cst_51 : f32 to vector<8x32xf32>
    %175 = arith.subf %173, %174 : vector<8x32xf32>
    %176 = vector.extract_strided_slice %168 {offsets = [0, 96], sizes = [8, 32], strides = [1, 1]} : vector<8x128xf32> to vector<8x32xf32>
    %177 = arith.mulf %170, %136 : vector<8x32xf32>
    %178 = arith.mulf %169, %175 : vector<8x32xf32>
    %179 = arith.addf %177, %178 : vector<8x32xf32>
    %180 = math.tanh %179 : vector<8x32xf32>
    %181 = arith.mulf %176, %180 : vector<8x32xf32>
    %cst_52 = arith.constant dense<0.000000e+00> : vector<8x128xf32>
    %182 = tpu.matmul %181, %4, %cst_52 {dimension_numbers = #tpu.dot_dimension_numbers<[1], [0], [0], [1], [0, 0, 1, 1], [], []>} : vector<8x32xf32>, vector<32x128xf32>, vector<8x128xf32> -> vector<8x128xf32>
    %183 = arith.addf %182, %8 : vector<8x128xf32>
    %c32 = arith.constant 32 : index
    %c0_53 = arith.constant 0 : index
    %184 = vector.load %arg0[%c32, %c0_53] : memref<64x128xf32, #tpu.memory_space<vmem>>, vector<8x128xf32>
    %185 = arith.addf %184, %161 : vector<8x128xf32>
    %186 = arith.negf %185 : vector<8x128xf32>
    %187 = math.exp %186 : vector<8x128xf32>
    %cst_54 = arith.constant 1.000000e+00 : f32
    %188 = vector.broadcast %cst_54 : f32 to vector<8x128xf32>
    %189 = arith.addf %188, %187 : vector<8x128xf32>
    %190 = arith.divf %188, %189 : vector<8x128xf32>
    %191 = vector.extract_strided_slice %190 {offsets = [0, 0], sizes = [8, 32], strides = [1, 1]} : vector<8x128xf32> to vector<8x32xf32>
    %192 = vector.extract_strided_slice %190 {offsets = [0, 32], sizes = [8, 32], strides = [1, 1]} : vector<8x128xf32> to vector<8x32xf32>
    %193 = vector.extract_strided_slice %190 {offsets = [0, 64], sizes = [8, 32], strides = [1, 1]} : vector<8x128xf32> to vector<8x32xf32>
    %cst_55 = arith.constant 2.000000e+00 : f32
    %194 = vector.broadcast %cst_55 : f32 to vector<8x32xf32>
    %195 = arith.mulf %194, %193 : vector<8x32xf32>
    %cst_56 = arith.constant 1.000000e+00 : f32
    %196 = vector.broadcast %cst_56 : f32 to vector<8x32xf32>
    %197 = arith.subf %195, %196 : vector<8x32xf32>
    %198 = vector.extract_strided_slice %190 {offsets = [0, 96], sizes = [8, 32], strides = [1, 1]} : vector<8x128xf32> to vector<8x32xf32>
    %199 = arith.mulf %192, %158 : vector<8x32xf32>
    %200 = arith.mulf %191, %197 : vector<8x32xf32>
    %201 = arith.addf %199, %200 : vector<8x32xf32>
    %202 = math.tanh %201 : vector<8x32xf32>
    %203 = arith.mulf %198, %202 : vector<8x32xf32>
    %cst_57 = arith.constant dense<0.000000e+00> : vector<8x128xf32>
    %204 = tpu.matmul %203, %0, %cst_57 {dimension_numbers = #tpu.dot_dimension_numbers<[1], [0], [0], [1], [0, 0, 1, 1], [], []>} : vector<8x32xf32>, vector<32x128xf32>, vector<8x128xf32> -> vector<8x128xf32>
    %cst_58 = arith.constant dense<0.000000e+00> : vector<8x128xf32>
    %205 = tpu.matmul %203, %2, %cst_58 {dimension_numbers = #tpu.dot_dimension_numbers<[1], [0], [0], [1], [0, 0, 1, 1], [], []>} : vector<8x32xf32>, vector<32x128xf32>, vector<8x128xf32> -> vector<8x128xf32>
    %206 = arith.addf %205, %183 : vector<8x128xf32>
    %207 = arith.negf %206 : vector<8x128xf32>
    %208 = math.exp %207 : vector<8x128xf32>
    %cst_59 = arith.constant 1.000000e+00 : f32
    %209 = vector.broadcast %cst_59 : f32 to vector<8x128xf32>
    %210 = arith.addf %209, %208 : vector<8x128xf32>
    %211 = arith.divf %209, %210 : vector<8x128xf32>
    %212 = vector.extract_strided_slice %211 {offsets = [0, 0], sizes = [8, 32], strides = [1, 1]} : vector<8x128xf32> to vector<8x32xf32>
    %213 = vector.extract_strided_slice %211 {offsets = [0, 32], sizes = [8, 32], strides = [1, 1]} : vector<8x128xf32> to vector<8x32xf32>
    %214 = vector.extract_strided_slice %211 {offsets = [0, 64], sizes = [8, 32], strides = [1, 1]} : vector<8x128xf32> to vector<8x32xf32>
    %cst_60 = arith.constant 2.000000e+00 : f32
    %215 = vector.broadcast %cst_60 : f32 to vector<8x32xf32>
    %216 = arith.mulf %215, %214 : vector<8x32xf32>
    %cst_61 = arith.constant 1.000000e+00 : f32
    %217 = vector.broadcast %cst_61 : f32 to vector<8x32xf32>
    %218 = arith.subf %216, %217 : vector<8x32xf32>
    %219 = vector.extract_strided_slice %211 {offsets = [0, 96], sizes = [8, 32], strides = [1, 1]} : vector<8x128xf32> to vector<8x32xf32>
    %220 = arith.mulf %213, %179 : vector<8x32xf32>
    %221 = arith.mulf %212, %218 : vector<8x32xf32>
    %222 = arith.addf %220, %221 : vector<8x32xf32>
    %223 = math.tanh %222 : vector<8x32xf32>
    %224 = arith.mulf %219, %223 : vector<8x32xf32>
    %cst_62 = arith.constant dense<0.000000e+00> : vector<8x128xf32>
    %225 = tpu.matmul %224, %4, %cst_62 {dimension_numbers = #tpu.dot_dimension_numbers<[1], [0], [0], [1], [0, 0, 1, 1], [], []>} : vector<8x32xf32>, vector<32x128xf32>, vector<8x128xf32> -> vector<8x128xf32>
    %226 = arith.addf %225, %8 : vector<8x128xf32>
    %c40 = arith.constant 40 : index
    %c0_63 = arith.constant 0 : index
    %227 = vector.load %arg0[%c40, %c0_63] : memref<64x128xf32, #tpu.memory_space<vmem>>, vector<8x128xf32>
    %228 = arith.addf %227, %204 : vector<8x128xf32>
    %229 = arith.negf %228 : vector<8x128xf32>
    %230 = math.exp %229 : vector<8x128xf32>
    %cst_64 = arith.constant 1.000000e+00 : f32
    %231 = vector.broadcast %cst_64 : f32 to vector<8x128xf32>
    %232 = arith.addf %231, %230 : vector<8x128xf32>
    %233 = arith.divf %231, %232 : vector<8x128xf32>
    %234 = vector.extract_strided_slice %233 {offsets = [0, 0], sizes = [8, 32], strides = [1, 1]} : vector<8x128xf32> to vector<8x32xf32>
    %235 = vector.extract_strided_slice %233 {offsets = [0, 32], sizes = [8, 32], strides = [1, 1]} : vector<8x128xf32> to vector<8x32xf32>
    %236 = vector.extract_strided_slice %233 {offsets = [0, 64], sizes = [8, 32], strides = [1, 1]} : vector<8x128xf32> to vector<8x32xf32>
    %cst_65 = arith.constant 2.000000e+00 : f32
    %237 = vector.broadcast %cst_65 : f32 to vector<8x32xf32>
    %238 = arith.mulf %237, %236 : vector<8x32xf32>
    %cst_66 = arith.constant 1.000000e+00 : f32
    %239 = vector.broadcast %cst_66 : f32 to vector<8x32xf32>
    %240 = arith.subf %238, %239 : vector<8x32xf32>
    %241 = vector.extract_strided_slice %233 {offsets = [0, 96], sizes = [8, 32], strides = [1, 1]} : vector<8x128xf32> to vector<8x32xf32>
    %242 = arith.mulf %235, %201 : vector<8x32xf32>
    %243 = arith.mulf %234, %240 : vector<8x32xf32>
    %244 = arith.addf %242, %243 : vector<8x32xf32>
    %245 = math.tanh %244 : vector<8x32xf32>
    %246 = arith.mulf %241, %245 : vector<8x32xf32>
    %cst_67 = arith.constant dense<0.000000e+00> : vector<8x128xf32>
    %247 = tpu.matmul %246, %0, %cst_67 {dimension_numbers = #tpu.dot_dimension_numbers<[1], [0], [0], [1], [0, 0, 1, 1], [], []>} : vector<8x32xf32>, vector<32x128xf32>, vector<8x128xf32> -> vector<8x128xf32>
    %cst_68 = arith.constant dense<0.000000e+00> : vector<8x128xf32>
    %248 = tpu.matmul %246, %2, %cst_68 {dimension_numbers = #tpu.dot_dimension_numbers<[1], [0], [0], [1], [0, 0, 1, 1], [], []>} : vector<8x32xf32>, vector<32x128xf32>, vector<8x128xf32> -> vector<8x128xf32>
    %249 = arith.addf %248, %226 : vector<8x128xf32>
    %250 = arith.negf %249 : vector<8x128xf32>
    %251 = math.exp %250 : vector<8x128xf32>
    %cst_69 = arith.constant 1.000000e+00 : f32
    %252 = vector.broadcast %cst_69 : f32 to vector<8x128xf32>
    %253 = arith.addf %252, %251 : vector<8x128xf32>
    %254 = arith.divf %252, %253 : vector<8x128xf32>
    %255 = vector.extract_strided_slice %254 {offsets = [0, 0], sizes = [8, 32], strides = [1, 1]} : vector<8x128xf32> to vector<8x32xf32>
    %256 = vector.extract_strided_slice %254 {offsets = [0, 32], sizes = [8, 32], strides = [1, 1]} : vector<8x128xf32> to vector<8x32xf32>
    %257 = vector.extract_strided_slice %254 {offsets = [0, 64], sizes = [8, 32], strides = [1, 1]} : vector<8x128xf32> to vector<8x32xf32>
    %cst_70 = arith.constant 2.000000e+00 : f32
    %258 = vector.broadcast %cst_70 : f32 to vector<8x32xf32>
    %259 = arith.mulf %258, %257 : vector<8x32xf32>
    %cst_71 = arith.constant 1.000000e+00 : f32
    %260 = vector.broadcast %cst_71 : f32 to vector<8x32xf32>
    %261 = arith.subf %259, %260 : vector<8x32xf32>
    %262 = vector.extract_strided_slice %254 {offsets = [0, 96], sizes = [8, 32], strides = [1, 1]} : vector<8x128xf32> to vector<8x32xf32>
    %263 = arith.mulf %256, %222 : vector<8x32xf32>
    %264 = arith.mulf %255, %261 : vector<8x32xf32>
    %265 = arith.addf %263, %264 : vector<8x32xf32>
    %266 = math.tanh %265 : vector<8x32xf32>
    %267 = arith.mulf %262, %266 : vector<8x32xf32>
    %cst_72 = arith.constant dense<0.000000e+00> : vector<8x128xf32>
    %268 = tpu.matmul %267, %4, %cst_72 {dimension_numbers = #tpu.dot_dimension_numbers<[1], [0], [0], [1], [0, 0, 1, 1], [], []>} : vector<8x32xf32>, vector<32x128xf32>, vector<8x128xf32> -> vector<8x128xf32>
    %269 = arith.addf %268, %8 : vector<8x128xf32>
    %c48 = arith.constant 48 : index
    %c0_73 = arith.constant 0 : index
    %270 = vector.load %arg0[%c48, %c0_73] : memref<64x128xf32, #tpu.memory_space<vmem>>, vector<8x128xf32>
    %271 = arith.addf %270, %247 : vector<8x128xf32>
    %272 = arith.negf %271 : vector<8x128xf32>
    %273 = math.exp %272 : vector<8x128xf32>
    %cst_74 = arith.constant 1.000000e+00 : f32
    %274 = vector.broadcast %cst_74 : f32 to vector<8x128xf32>
    %275 = arith.addf %274, %273 : vector<8x128xf32>
    %276 = arith.divf %274, %275 : vector<8x128xf32>
    %277 = vector.extract_strided_slice %276 {offsets = [0, 0], sizes = [8, 32], strides = [1, 1]} : vector<8x128xf32> to vector<8x32xf32>
    %278 = vector.extract_strided_slice %276 {offsets = [0, 32], sizes = [8, 32], strides = [1, 1]} : vector<8x128xf32> to vector<8x32xf32>
    %279 = vector.extract_strided_slice %276 {offsets = [0, 64], sizes = [8, 32], strides = [1, 1]} : vector<8x128xf32> to vector<8x32xf32>
    %cst_75 = arith.constant 2.000000e+00 : f32
    %280 = vector.broadcast %cst_75 : f32 to vector<8x32xf32>
    %281 = arith.mulf %280, %279 : vector<8x32xf32>
    %cst_76 = arith.constant 1.000000e+00 : f32
    %282 = vector.broadcast %cst_76 : f32 to vector<8x32xf32>
    %283 = arith.subf %281, %282 : vector<8x32xf32>
    %284 = vector.extract_strided_slice %276 {offsets = [0, 96], sizes = [8, 32], strides = [1, 1]} : vector<8x128xf32> to vector<8x32xf32>
    %285 = arith.mulf %278, %244 : vector<8x32xf32>
    %286 = arith.mulf %277, %283 : vector<8x32xf32>
    %287 = arith.addf %285, %286 : vector<8x32xf32>
    %288 = math.tanh %287 : vector<8x32xf32>
    %289 = arith.mulf %284, %288 : vector<8x32xf32>
    %cst_77 = arith.constant dense<0.000000e+00> : vector<8x128xf32>
    %290 = tpu.matmul %289, %0, %cst_77 {dimension_numbers = #tpu.dot_dimension_numbers<[1], [0], [0], [1], [0, 0, 1, 1], [], []>} : vector<8x32xf32>, vector<32x128xf32>, vector<8x128xf32> -> vector<8x128xf32>
    %cst_78 = arith.constant dense<0.000000e+00> : vector<8x128xf32>
    %291 = tpu.matmul %289, %2, %cst_78 {dimension_numbers = #tpu.dot_dimension_numbers<[1], [0], [0], [1], [0, 0, 1, 1], [], []>} : vector<8x32xf32>, vector<32x128xf32>, vector<8x128xf32> -> vector<8x128xf32>
    %292 = arith.addf %291, %269 : vector<8x128xf32>
    %293 = arith.negf %292 : vector<8x128xf32>
    %294 = math.exp %293 : vector<8x128xf32>
    %cst_79 = arith.constant 1.000000e+00 : f32
    %295 = vector.broadcast %cst_79 : f32 to vector<8x128xf32>
    %296 = arith.addf %295, %294 : vector<8x128xf32>
    %297 = arith.divf %295, %296 : vector<8x128xf32>
    %298 = vector.extract_strided_slice %297 {offsets = [0, 0], sizes = [8, 32], strides = [1, 1]} : vector<8x128xf32> to vector<8x32xf32>
    %299 = vector.extract_strided_slice %297 {offsets = [0, 32], sizes = [8, 32], strides = [1, 1]} : vector<8x128xf32> to vector<8x32xf32>
    %300 = vector.extract_strided_slice %297 {offsets = [0, 64], sizes = [8, 32], strides = [1, 1]} : vector<8x128xf32> to vector<8x32xf32>
    %cst_80 = arith.constant 2.000000e+00 : f32
    %301 = vector.broadcast %cst_80 : f32 to vector<8x32xf32>
    %302 = arith.mulf %301, %300 : vector<8x32xf32>
    %cst_81 = arith.constant 1.000000e+00 : f32
    %303 = vector.broadcast %cst_81 : f32 to vector<8x32xf32>
    %304 = arith.subf %302, %303 : vector<8x32xf32>
    %305 = vector.extract_strided_slice %297 {offsets = [0, 96], sizes = [8, 32], strides = [1, 1]} : vector<8x128xf32> to vector<8x32xf32>
    %306 = arith.mulf %299, %265 : vector<8x32xf32>
    %307 = arith.mulf %298, %304 : vector<8x32xf32>
    %308 = arith.addf %306, %307 : vector<8x32xf32>
    %309 = math.tanh %308 : vector<8x32xf32>
    %310 = arith.mulf %305, %309 : vector<8x32xf32>
    %cst_82 = arith.constant dense<0.000000e+00> : vector<8x128xf32>
    %311 = tpu.matmul %310, %4, %cst_82 {dimension_numbers = #tpu.dot_dimension_numbers<[1], [0], [0], [1], [0, 0, 1, 1], [], []>} : vector<8x32xf32>, vector<32x128xf32>, vector<8x128xf32> -> vector<8x128xf32>
    %312 = arith.addf %311, %8 : vector<8x128xf32>
    %c56 = arith.constant 56 : index
    %c0_83 = arith.constant 0 : index
    %313 = vector.load %arg0[%c56, %c0_83] : memref<64x128xf32, #tpu.memory_space<vmem>>, vector<8x128xf32>
    %314 = arith.addf %313, %290 : vector<8x128xf32>
    %315 = arith.negf %314 : vector<8x128xf32>
    %316 = math.exp %315 : vector<8x128xf32>
    %cst_84 = arith.constant 1.000000e+00 : f32
    %317 = vector.broadcast %cst_84 : f32 to vector<8x128xf32>
    %318 = arith.addf %317, %316 : vector<8x128xf32>
    %319 = arith.divf %317, %318 : vector<8x128xf32>
    %320 = vector.extract_strided_slice %319 {offsets = [0, 0], sizes = [8, 32], strides = [1, 1]} : vector<8x128xf32> to vector<8x32xf32>
    %321 = vector.extract_strided_slice %319 {offsets = [0, 32], sizes = [8, 32], strides = [1, 1]} : vector<8x128xf32> to vector<8x32xf32>
    %322 = vector.extract_strided_slice %319 {offsets = [0, 64], sizes = [8, 32], strides = [1, 1]} : vector<8x128xf32> to vector<8x32xf32>
    %cst_85 = arith.constant 2.000000e+00 : f32
    %323 = vector.broadcast %cst_85 : f32 to vector<8x32xf32>
    %324 = arith.mulf %323, %322 : vector<8x32xf32>
    %cst_86 = arith.constant 1.000000e+00 : f32
    %325 = vector.broadcast %cst_86 : f32 to vector<8x32xf32>
    %326 = arith.subf %324, %325 : vector<8x32xf32>
    %327 = vector.extract_strided_slice %319 {offsets = [0, 96], sizes = [8, 32], strides = [1, 1]} : vector<8x128xf32> to vector<8x32xf32>
    %328 = arith.mulf %321, %287 : vector<8x32xf32>
    %329 = arith.mulf %320, %326 : vector<8x32xf32>
    %330 = arith.addf %328, %329 : vector<8x32xf32>
    %331 = math.tanh %330 : vector<8x32xf32>
    %332 = arith.mulf %327, %331 : vector<8x32xf32>
    %cst_87 = arith.constant dense<0.000000e+00> : vector<8x128xf32>
    %333 = tpu.matmul %332, %2, %cst_87 {dimension_numbers = #tpu.dot_dimension_numbers<[1], [0], [0], [1], [0, 0, 1, 1], [], []>} : vector<8x32xf32>, vector<32x128xf32>, vector<8x128xf32> -> vector<8x128xf32>
    %334 = arith.addf %333, %312 : vector<8x128xf32>
    %335 = arith.negf %334 : vector<8x128xf32>
    %336 = math.exp %335 : vector<8x128xf32>
    %cst_88 = arith.constant 1.000000e+00 : f32
    %337 = vector.broadcast %cst_88 : f32 to vector<8x128xf32>
    %338 = arith.addf %337, %336 : vector<8x128xf32>
    %339 = arith.divf %337, %338 : vector<8x128xf32>
    %340 = vector.extract_strided_slice %339 {offsets = [0, 0], sizes = [8, 32], strides = [1, 1]} : vector<8x128xf32> to vector<8x32xf32>
    %341 = vector.extract_strided_slice %339 {offsets = [0, 32], sizes = [8, 32], strides = [1, 1]} : vector<8x128xf32> to vector<8x32xf32>
    %342 = vector.extract_strided_slice %339 {offsets = [0, 64], sizes = [8, 32], strides = [1, 1]} : vector<8x128xf32> to vector<8x32xf32>
    %cst_89 = arith.constant 2.000000e+00 : f32
    %343 = vector.broadcast %cst_89 : f32 to vector<8x32xf32>
    %344 = arith.mulf %343, %342 : vector<8x32xf32>
    %cst_90 = arith.constant 1.000000e+00 : f32
    %345 = vector.broadcast %cst_90 : f32 to vector<8x32xf32>
    %346 = arith.subf %344, %345 : vector<8x32xf32>
    %347 = vector.extract_strided_slice %339 {offsets = [0, 96], sizes = [8, 32], strides = [1, 1]} : vector<8x128xf32> to vector<8x32xf32>
    %348 = arith.mulf %341, %308 : vector<8x32xf32>
    %349 = arith.mulf %340, %346 : vector<8x32xf32>
    %350 = arith.addf %348, %349 : vector<8x32xf32>
    %351 = math.tanh %350 : vector<8x32xf32>
    %352 = arith.mulf %347, %351 : vector<8x32xf32>
    %c0_91 = arith.constant 0 : index
    %c0_92 = arith.constant 0 : index
    %353 = vector.load %arg5[%c0_91, %c0_92] : memref<32x32xf32, #tpu.memory_space<vmem>>, vector<32x32xf32>
    %cst_93 = arith.constant dense<0.000000e+00> : vector<8x32xf32>
    %354 = tpu.matmul %352, %353, %cst_93 {dimension_numbers = #tpu.dot_dimension_numbers<[1], [0], [0], [1], [0, 0, 1, 1], [], []>} : vector<8x32xf32>, vector<32x32xf32>, vector<8x32xf32> -> vector<8x32xf32>
    %c0_94 = arith.constant 0 : index
    %c0_95 = arith.constant 0 : index
    %355 = vector.load %arg6[%c0_94, %c0_95] : memref<1x32xf32, #tpu.memory_space<vmem>>, vector<1x32xf32>
    %356 = vector.broadcast %355 : vector<1x32xf32> to vector<8x32xf32>
    %357 = arith.addf %354, %356 : vector<8x32xf32>
    %c0_96 = arith.constant 0 : index
    %c0_97 = arith.constant 0 : index
    %358 = vector.load %arg7[%c0_96, %c0_97] : memref<8x32xf32, #tpu.memory_space<vmem>>, vector<8x32xf32>
    tpu.vector_store %arg7[%c0_96, %c0_97], %357 {strides = array<i32>} : memref<8x32xf32, #tpu.memory_space<vmem>>, vector<8x32xf32>,
    return
  }
}

</mosaic_0001>

<llo_original>
// kernel: deeplog_forward.1
$region0: #{deeplog_forward.1}
  #allocation0 [shape = 'u32[]', space=smem, size = 0x4, offset = 0x4, fixed_abs, tag = 'smem constant byte address 0x4 - core index']
  #allocation1 [shape = 'u32[72,128]{1,0:T(1,128)}', space=vmem, size = 0x9000, scoped, tag = 'internal scratch']
  %s0 = inlined_call_operand.vmem [shape: f32[64,128], index: 0, kind: input, shape index: {}]
  %s1 = inlined_call_operand.vmem [shape: f32[32,128], index: 1, kind: input, shape index: {}]
  %s2 = inlined_call_operand.vmem [shape: f32[1,32,128], index: 2, kind: input, shape index: {}]
  %s3 = inlined_call_operand.vmem [shape: f32[1,32,128], index: 3, kind: input, shape index: {}]
  %s4 = inlined_call_operand.vmem [shape: f32[1,1,128], index: 4, kind: input, shape index: {}]
  %s5 = inlined_call_operand.vmem [shape: f32[32,32], index: 5, kind: input, shape index: {}]
  %s6 = inlined_call_operand.vmem [shape: f32[1,32], index: 6, kind: input, shape index: {}]
  %s7 = inlined_call_operand.hbm [shape: f32[8,32], index: 7, kind: output, shape index: {}]
  %s8 = sld [smem:[#allocation0]]
  $region38: #{deeplog_forward.1} parent=0
    _
  %s10 = ssub.s32 1, %s8
  %s11 = scalar_select 0, %s10, %s8
  $region1: #{deeplog_forward.1} parent=0
    #allocation2 [shape = 'u8[4096]{0}', space=vmem, size = 0x1000, scoped, tag = 'output window, operand 0, single buffered']
    #allocation3 [shape = 's32[1]{0}', space=sflag, size = 0x4, scoped, tag = 'scoped memory for deeplog_forward.1']
    %12 = vsyncpa [#allocation3], 0
    // Predicated region
    $region2: #{deeplog_forward.1} parent=1 // pred_check
      _
    $region3: #{deeplog_forward.1} parent=1 // pred_check_branch
      %14 = sbr.rel (0) target = $region5
    $region4: #{deeplog_forward.1} parent=1 // pred_region
      _
    $region5: #{deeplog_forward.1} parent=1 // pred_fallthru
      _
    // Predicated region
    $region6: #{deeplog_forward.1} parent=1 // pred_check
      _
    $region7: #{deeplog_forward.1} parent=1 // pred_check_branch
      %16 = sbr.rel (0) target = $region9
    $region8: #{deeplog_forward.1} parent=1 // pred_region
      _
    $region9: #{deeplog_forward.1} parent=1 // pred_fallthru
      _
    // Predicated region
    $region10: #{deeplog_forward.1} parent=1 // pred_check
      _
    $region11: #{deeplog_forward.1} parent=1 // pred_check_branch
      %18 = sbr.rel (0) target = $region13
    $region12: #{deeplog_forward.1} parent=1 // pred_region
      _
    $region13: #{deeplog_forward.1} parent=1 // pred_fallthru
      _
    // Predicated region
    $region14: #{deeplog_forward.1} parent=1 // pred_check
      _
    $region15: #{deeplog_forward.1} parent=1 // pred_check_branch
      %20 = sbr.rel (0) target = $region17
    $region16: #{deeplog_forward.1} parent=1 // pred_region
      _
    $region17: #{deeplog_forward.1} parent=1 // pred_fallthru
      _
    // Predicated region
    $region18: #{deeplog_forward.1} parent=1 // pred_check
      _
    $region19: #{deeplog_forward.1} parent=1 // pred_check_branch
      %22 = sbr.rel (0) target = $region21
    $region20: #{deeplog_forward.1} parent=1 // pred_region
      _
    $region21: #{deeplog_forward.1} parent=1 // pred_fallthru
      _
    // Predicated region
    $region22: #{deeplog_forward.1} parent=1 // pred_check
      _
    $region23: #{deeplog_forward.1} parent=1 // pred_check_branch
      %24 = sbr.rel (0) target = $region25
    $region24: #{deeplog_forward.1} parent=1 // pred_region
      _
    $region25: #{deeplog_forward.1} parent=1 // pred_fallthru
      _
    // Predicated region
    $region26: #{deeplog_forward.1} parent=1 // pred_check
      _
    $region27: #{deeplog_forward.1} parent=1 // pred_check_branch
      %26 = sbr.rel (0) target = $region29
    $region28: #{deeplog_forward.1} parent=1 // pred_region
      _
    $region29: #{deeplog_forward.1} parent=1 // pred_fallthru
      _
    %v27 = vld [vmem:[%s1] sm:$0xff]
    %v28 = vld [vmem:[%s1 + $0x8] sm:$0xff]
    %v29 = vld [vmem:[%s1 + $0x10] sm:$0xff]
    %v30 = vld [vmem:[%s1 + $0x18] sm:$0xff]
    %v31 = vld [vmem:[%s2] sm:$0xff]
    %v32 = vld [vmem:[%s2 + $0x8] sm:$0xff]
    %v33 = vld [vmem:[%s2 + $0x10] sm:$0xff]
    %v34 = vld [vmem:[%s2 + $0x18] sm:$0xff]
    %v35 = vld [vmem:[%s3] sm:$0xff]
    %v36 = vld [vmem:[%s3 + $0x8] sm:$0xff]
    %v37 = vld [vmem:[%s3 + $0x10] sm:$0xff]
    %v38 = vld [vmem:[%s3 + $0x18] sm:$0xff]
    %v39 = vld [vmem:[%s4] sm:$0x1]
    %v41 = vperm.slane %v39, 0
    %v43 = vld [vmem:[%s0] sm:$0xff]
    %v44 = vadd.f32 %v43, 0.0
    %v45 = vxor.u32 %v44, 2147483648
    %v46 = vmul.f32 %v45, 1.442695
    %v47 = vpow.pop %v46
    %v48 = vadd.f32 %v47, 1.0
    %v49 = vrcp.pop %v48
    %v50 = vmul.f32 %v48, %v49
    %v51 = vsub.f32 1.0, %v50
    %v52 = vmul.f32 %v49, %v51
    %v53 = vadd.f32 %v49, %v52
    %vm54 = vweird.f32 %v48
    %vm55 = vweird.f32 %v49
    %vm56 = vmor %vm54, %vm55
    %v57 = vsel %vm56, %v49, %v53
    %v58 = vand.u32 2147483647, %v48
    %vm59 = vcmp.eq.f32.partialorder %v58, 8.507059e+37
    %v60 = vand.u32 %v48, 2147483648
    %v61 = vor.u32 1.1754944e-38, %v60
    %v62 = vsel %vm59, %v61, %v57
    %v63 = vmul.f32 1.0, %v62
    %v64 = vmul.f32 %v63, 2.0
    %v65 = vsub.f32 %v64, 1.0
    %v66 = vmul.f32 %v63, 0.0
    %68 = vrot.lane.b32.xlu0 %v65, 64
    %v69 = vpop.permute.xlu0 %68
    %v71 = vmul.f32 %v63, %v69
    %73 = vrot.lane.b32.xlu0 %v71, 32
    %v74 = vpop.permute.xlu0 %73
    %v76 = vadd.f32 %v66, %v74
    %v77 = vtanh.pop %v76
    %79 = vrot.lane.b32.xlu0 %v77, 64
    %v80 = vpop.permute.xlu0 %79
    %v82 = vmul.f32 %v63, %v80
    %84 = vrot.lane.b32.xlu0 %v82, 32
    %v85 = vpop.permute.xlu0 %84
    %vm86 = vcmask 261120
    %v87 = vsel %vm86, %v85, 0
    %89 = vmatpush.msra.mxu0 0.0
    %90 = vmatpush.msra.mxu0 0.0
    %91 = vmatpush.msra.mxu0 0.0
    %92 = vmatpush.msra.mxu0 0.0
    %93 = vmatpush.msra.mxu0 0.0
    %94 = vmatpush.msra.mxu0 0.0
    %95 = vmatpush.msra.mxu0 0.0
    %96 = vmatpush.msra.mxu0 0.0
    %97 = vmatpush.msra.mxu0 0.0
    %98 = vmatpush.msra.mxu0 0.0
    %99 = vmatpush.msra.mxu0 0.0
    %100 = vmatpush.msra.mxu0 0.0
    %101 = vmatpush.msra.mxu0 %v30
    %102 = vmatpush.msra.mxu0 %v29
    %103 = vmatpush.msra.mxu0 %v28
    %104 = vmatpush.msra.mxu0 %v27
    %105 = vmatmul.f32.gmra.mxu0 %v87
    %v106 = vpop.f32.mrf.mxu0
    %v107 = vadd.f32 0.0, %v106
    %108 = vdwg.mxu0
    %109 = vmatpush.msra.mxu0 0.0
    %110 = vmatpush.msra.mxu0 0.0
    %111 = vmatpush.msra.mxu0 0.0
    %112 = vmatpush.msra.mxu0 0.0
    %113 = vmatpush.msra.mxu0 0.0
    %114 = vmatpush.msra.mxu0 0.0
    %115 = vmatpush.msra.mxu0 0.0
    %116 = vmatpush.msra.mxu0 0.0
    %117 = vmatpush.msra.mxu0 0.0
    %118 = vmatpush.msra.mxu0 0.0
    %119 = vmatpush.msra.mxu0 0.0
    %120 = vmatpush.msra.mxu0 0.0
    %121 = vmatpush.msra.mxu0 %v34
    %122 = vmatpush.msra.mxu0 %v33
    %123 = vmatpush.msra.mxu0 %v32
    %124 = vmatpush.msra.mxu0 %v31
    %125 = vmatmul.f32.gmra.mxu0 %v87
    %v126 = vpop.f32.mrf.mxu0
    %v127 = vadd.f32 %v41, %v126
    %128 = vdwg.mxu0
    %v129 = vxor.u32 %v127, 2147483648
    %v130 = vmul.f32 %v129, 1.442695
    %v131 = vpow.pop %v130
    %v132 = vadd.f32 %v131, 1.0
    %v133 = vrcp.pop %v132
    %v134 = vmul.f32 %v132, %v133
    %v135 = vsub.f32 1.0, %v134
    %v136 = vmul.f32 %v133, %v135
    %v137 = vadd.f32 %v133, %v136
    %vm138 = vweird.f32 %v132
    %vm139 = vweird.f32 %v133
    %vm140 = vmor %vm138, %vm139
    %v141 = vsel %vm140, %v133, %v137
    %v142 = vand.u32 2147483647, %v132
    %vm143 = vcmp.eq.f32.partialorder %v142, 8.507059e+37
    %v144 = vand.u32 %v132, 2147483648
    %v145 = vor.u32 1.1754944e-38, %v144
    %v146 = vsel %vm143, %v145, %v141
    %v147 = vmul.f32 1.0, %v146
    %v148 = vmul.f32 %v147, 2.0
    %v149 = vsub.f32 %v148, 1.0
    %v150 = vmul.f32 %v147, 0.0
    %152 = vrot.lane.b32.xlu0 %v149, 64
    %v153 = vpop.permute.xlu0 %152
    %v155 = vmul.f32 %v147, %v153
    %157 = vrot.lane.b32.xlu0 %v155, 32
    %v158 = vpop.permute.xlu0 %157
    %v160 = vadd.f32 %v150, %v158
    %v161 = vtanh.pop %v160
    %163 = vrot.lane.b32.xlu0 %v161, 64
    %v164 = vpop.permute.xlu0 %163
    %v166 = vmul.f32 %v147, %v164
    %168 = vrot.lane.b32.xlu0 %v166, 32
    %v169 = vpop.permute.xlu0 %168
    %v170 = vsel %vm86, %v169, 0
    %172 = vmatpush.msra.mxu0 0.0
    %173 = vmatpush.msra.mxu0 0.0
    %174 = vmatpush.msra.mxu0 0.0
    %175 = vmatpush.msra.mxu0 0.0
    %176 = vmatpush.msra.mxu0 0.0
    %177 = vmatpush.msra.mxu0 0.0
    %178 = vmatpush.msra.mxu0 0.0
    %179 = vmatpush.msra.mxu0 0.0
    %180 = vmatpush.msra.mxu0 0.0
    %181 = vmatpush.msra.mxu0 0.0
    %182 = vmatpush.msra.mxu0 0.0
    %183 = vmatpush.msra.mxu0 0.0
    %184 = vmatpush.msra.mxu0 %v38
    %185 = vmatpush.msra.mxu0 %v37
    %186 = vmatpush.msra.mxu0 %v36
    %187 = vmatpush.msra.mxu0 %v35
    %188 = vmatmul.f32.gmra.mxu0 %v170
    %v189 = vpop.f32.mrf.mxu0
    %v190 = vadd.f32 %v41, %v189
    %191 = vdwg.mxu0
    %v192 = vld [vmem:[%s0 + $0x8] sm:$0xff]
    %v193 = vadd.f32 %v192, %v107
    %v194 = vxor.u32 %v193, 2147483648
    %v195 = vmul.f32 %v194, 1.442695
    %v196 = vpow.pop %v195
    %v197 = vadd.f32 %v196, 1.0
    %v198 = vrcp.pop %v197
    %v199 = vmul.f32 %v197, %v198
    %v200 = vsub.f32 1.0, %v199
    %v201 = vmul.f32 %v198, %v200
    %v202 = vadd.f32 %v198, %v201
    %vm203 = vweird.f32 %v197
    %vm204 = vweird.f32 %v198
    %vm205 = vmor %vm203, %vm204
    %v206 = vsel %vm205, %v198, %v202
    %v207 = vand.u32 2147483647, %v197
    %vm208 = vcmp.eq.f32.partialorder %v207, 8.507059e+37
    %v209 = vand.u32 %v197, 2147483648
    %v210 = vor.u32 1.1754944e-38, %v209
    %v211 = vsel %vm208, %v210, %v206
    %v212 = vmul.f32 1.0, %v211
    %v213 = vmul.f32 %v212, 2.0
    %v214 = vsub.f32 %v213, 1.0
    %v215 = vmul.f32 %v212, %v76
    %217 = vrot.lane.b32.xlu0 %v214, 64
    %v218 = vpop.permute.xlu0 %217
    %v220 = vmul.f32 %v212, %v218
    %222 = vrot.lane.b32.xlu0 %v220, 32
    %v223 = vpop.permute.xlu0 %222
    %v225 = vadd.f32 %v215, %v223
    %v226 = vtanh.pop %v225
    %228 = vrot.lane.b32.xlu0 %v226, 64
    %v229 = vpop.permute.xlu0 %228
    %v231 = vmul.f32 %v212, %v229
    %233 = vrot.lane.b32.xlu0 %v231, 32
    %v234 = vpop.permute.xlu0 %233
    %v235 = vsel %vm86, %v234, 0
    %237 = vmatpush.msra.mxu0 0.0
    %238 = vmatpush.msra.mxu0 0.0
    %239 = vmatpush.msra.mxu0 0.0
    %240 = vmatpush.msra.mxu0 0.0
    %241 = vmatpush.msra.mxu0 0.0
    %242 = vmatpush.msra.mxu0 0.0
    %243 = vmatpush.msra.mxu0 0.0
    %244 = vmatpush.msra.mxu0 0.0
    %245 = vmatpush.msra.mxu0 0.0
    %246 = vmatpush.msra.mxu0 0.0
    %247 = vmatpush.msra.mxu0 0.0
    %248 = vmatpush.msra.mxu0 0.0
    %249 = vmatpush.msra.mxu0 %v30
    %250 = vmatpush.msra.mxu0 %v29
    %251 = vmatpush.msra.mxu0 %v28
    %252 = vmatpush.msra.mxu0 %v27
    %253 = vmatmul.f32.gmra.mxu0 %v235
    %v254 = vpop.f32.mrf.mxu0
    %v255 = vadd.f32 0.0, %v254
    %256 = vdwg.mxu0
    %257 = vmatpush.msra.mxu0 0.0
    %258 = vmatpush.msra.mxu0 0.0
    %259 = vmatpush.msra.mxu0 0.0
    %260 = vmatpush.msra.mxu0 0.0
    %261 = vmatpush.msra.mxu0 0.0
    %262 = vmatpush.msra.mxu0 0.0
    %263 = vmatpush.msra.mxu0 0.0
    %264 = vmatpush.msra.mxu0 0.0
    %265 = vmatpush.msra.mxu0 0.0
    %266 = vmatpush.msra.mxu0 0.0
    %267 = vmatpush.msra.mxu0 0.0
    %268 = vmatpush.msra.mxu0 0.0
    %269 = vmatpush.msra.mxu0 %v34
    %270 = vmatpush.msra.mxu0 %v33
    %271 = vmatpush.msra.mxu0 %v32
    %272 = vmatpush.msra.mxu0 %v31
    %273 = vmatmul.f32.gmra.mxu0 %v235
    %v274 = vpop.f32.mrf.mxu0
    %v275 = vadd.f32 %v190, %v274
    %276 = vdwg.mxu0
    %v277 = vxor.u32 %v275, 2147483648
    %v278 = vmul.f32 %v277, 1.442695
    %v279 = vpow.pop %v278
    %v280 = vadd.f32 %v279, 1.0
    %v281 = vrcp.pop %v280
    %v282 = vmul.f32 %v280, %v281
    %v283 = vsub.f32 1.0, %v282
    %v284 = vmul.f32 %v281, %v283
    %v285 = vadd.f32 %v281, %v284
    %vm286 = vweird.f32 %v280
    %vm287 = vweird.f32 %v281
    %vm288 = vmor %vm286, %vm287
    %v289 = vsel %vm288, %v281, %v285
    %v290 = vand.u32 2147483647, %v280
    %vm291 = vcmp.eq.f32.partialorder %v290, 8.507059e+37
    %v292 = vand.u32 %v280, 2147483648
    %v293 = vor.u32 1.1754944e-38, %v292
    %v294 = vsel %vm291, %v293, %v289
    %v295 = vmul.f32 1.0, %v294
    %v296 = vmul.f32 %v295, 2.0
    %v297 = vsub.f32 %v296, 1.0
    %v298 = vmul.f32 %v295, %v160
    %300 = vrot.lane.b32.xlu0 %v297, 64
    %v301 = vpop.permute.xlu0 %300
    %v303 = vmul.f32 %v295, %v301
    %305 = vrot.lane.b32.xlu0 %v303, 32
    %v306 = vpop.permute.xlu0 %305
    %v308 = vadd.f32 %v298, %v306
    %v309 = vtanh.pop %v308
    %311 = vrot.lane.b32.xlu0 %v309, 64
    %v312 = vpop.permute.xlu0 %311
    %v314 = vmul.f32 %v295, %v312
    %316 = vrot.lane.b32.xlu0 %v314, 32
    %v317 = vpop.permute.xlu0 %316
    %v318 = vsel %vm86, %v317, 0
    %320 = vmatpush.msra.mxu0 0.0
    %321 = vmatpush.msra.mxu0 0.0
    %322 = vmatpush.msra.mxu0 0.0
    %323 = vmatpush.msra.mxu0 0.0
    %324 = vmatpush.msra.mxu0 0.0
    %325 = vmatpush.msra.mxu0 0.0
    %326 = vmatpush.msra.mxu0 0.0
    %327 = vmatpush.msra.mxu0 0.0
    %328 = vmatpush.msra.mxu0 0.0
    %329 = vmatpush.msra.mxu0 0.0
    %330 = vmatpush.msra.mxu0 0.0
    %331 = vmatpush.msra.mxu0 0.0
    %332 = vmatpush.msra.mxu0 %v38
    %333 = vmatpush.msra.mxu0 %v37
    %334 = vmatpush.msra.mxu0 %v36
    %335 = vmatpush.msra.mxu0 %v35
    %336 = vmatmul.f32.gmra.mxu0 %v318
    %v337 = vpop.f32.mrf.mxu0
    %v338 = vadd.f32 %v41, %v337
    %339 = vdwg.mxu0
    %v340 = vld [vmem:[%s0 + $0x10] sm:$0xff]
    %v341 = vadd.f32 %v340, %v255
    %v342 = vxor.u32 %v341, 2147483648
    %v343 = vmul.f32 %v342, 1.442695
    %v344 = vpow.pop %v343
    %v345 = vadd.f32 %v344, 1.0
    %v346 = vrcp.pop %v345
    %v347 = vmul.f32 %v345, %v346
    %v348 = vsub.f32 1.0, %v347
    %v349 = vmul.f32 %v346, %v348
    %v350 = vadd.f32 %v346, %v349
    %vm351 = vweird.f32 %v345
    %vm352 = vweird.f32 %v346
    %vm353 = vmor %vm351, %vm352
    %v354 = vsel %vm353, %v346, %v350
    %v355 = vand.u32 2147483647, %v345
    %vm356 = vcmp.eq.f32.partialorder %v355, 8.507059e+37
    %v357 = vand.u32 %v345, 2147483648
    %v358 = vor.u32 1.1754944e-38, %v357
    %v359 = vsel %vm356, %v358, %v354
    %v360 = vmul.f32 1.0, %v359
    %v361 = vmul.f32 %v360, 2.0
    %v362 = vsub.f32 %v361, 1.0
    %v363 = vmul.f32 %v360, %v225
    %365 = vrot.lane.b32.xlu0 %v362, 64
    %v366 = vpop.permute.xlu0 %365
    %v368 = vmul.f32 %v360, %v366
    %370 = vrot.lane.b32.xlu0 %v368, 32
    %v371 = vpop.permute.xlu0 %370
    %v373 = vadd.f32 %v363, %v371
    %v374 = vtanh.pop %v373
    %376 = vrot.lane.b32.xlu0 %v374, 64
    %v377 = vpop.permute.xlu0 %376
    %v379 = vmul.f32 %v360, %v377
    %381 = vrot.lane.b32.xlu0 %v379, 32
    %v382 = vpop.permute.xlu0 %381
    %v383 = vsel %vm86, %v382, 0
    %385 = vmatpush.msra.mxu0 0.0
    %386 = vmatpush.msra.mxu0 0.0
    %387 = vmatpush.msra.mxu0 0.0
    %388 = vmatpush.msra.mxu0 0.0
    %389 = vmatpush.msra.mxu0 0.0
    %390 = vmatpush.msra.mxu0 0.0
    %391 = vmatpush.msra.mxu0 0.0
    %392 = vmatpush.msra.mxu0 0.0
    %393 = vmatpush.msra.mxu0 0.0
    %394 = vmatpush.msra.mxu0 0.0
    %395 = vmatpush.msra.mxu0 0.0
    %396 = vmatpush.msra.mxu0 0.0
    %397 = vmatpush.msra.mxu0 %v30
    %398 = vmatpush.msra.mxu0 %v29
    %399 = vmatpush.msra.mxu0 %v28
    %400 = vmatpush.msra.mxu0 %v27
    %401 = vmatmul.f32.gmra.mxu0 %v383
    %v402 = vpop.f32.mrf.mxu0
    %v403 = vadd.f32 0.0, %v402
    %404 = vdwg.mxu0
    %405 = vmatpush.msra.mxu0 0.0
    %406 = vmatpush.msra.mxu0 0.0
    %407 = vmatpush.msra.mxu0 0.0
    %408 = vmatpush.msra.mxu0 0.0
    %409 = vmatpush.msra.mxu0 0.0
    %410 = vmatpush.msra.mxu0 0.0
    %411 = vmatpush.msra.mxu0 0.0
    %412 = vmatpush.msra.mxu0 0.0
    %413 = vmatpush.msra.mxu0 0.0
    %414 = vmatpush.msra.mxu0 0.0
    %415 = vmatpush.msra.mxu0 0.0
    %416 = vmatpush.msra.mxu0 0.0
    %417 = vmatpush.msra.mxu0 %v34
    %418 = vmatpush.msra.mxu0 %v33
    %419 = vmatpush.msra.mxu0 %v32
    %420 = vmatpush.msra.mxu0 %v31
    %421 = vmatmul.f32.gmra.mxu0 %v383
    %v422 = vpop.f32.mrf.mxu0
    %v423 = vadd.f32 %v338, %v422
    %424 = vdwg.mxu0
    %v425 = vxor.u32 %v423, 2147483648
    %v426 = vmul.f32 %v425, 1.442695
    %v427 = vpow.pop %v426
    %v428 = vadd.f32 %v427, 1.0
    %v429 = vrcp.pop %v428
    %v430 = vmul.f32 %v428, %v429
    %v431 = vsub.f32 1.0, %v430
    %v432 = vmul.f32 %v429, %v431
    %v433 = vadd.f32 %v429, %v432
    %vm434 = vweird.f32 %v428
    %vm435 = vweird.f32 %v429
    %vm436 = vmor %vm434, %vm435
    %v437 = vsel %vm436, %v429, %v433
    %v438 = vand.u32 2147483647, %v428
    %vm439 = vcmp.eq.f32.partialorder %v438, 8.507059e+37
    %v440 = vand.u32 %v428, 2147483648
    %v441 = vor.u32 1.1754944e-38, %v440
    %v442 = vsel %vm439, %v441, %v437
    %v443 = vmul.f32 1.0, %v442
    %v444 = vmul.f32 %v443, 2.0
    %v445 = vsub.f32 %v444, 1.0
    %v446 = vmul.f32 %v443, %v308
    %448 = vrot.lane.b32.xlu0 %v445, 64
    %v449 = vpop.permute.xlu0 %448
    %v451 = vmul.f32 %v443, %v449
    %453 = vrot.lane.b32.xlu0 %v451, 32
    %v454 = vpop.permute.xlu0 %453
    %v456 = vadd.f32 %v446, %v454
    %v457 = vtanh.pop %v456
    %459 = vrot.lane.b32.xlu0 %v457, 64
    %v460 = vpop.permute.xlu0 %459
    %v462 = vmul.f32 %v443, %v460
    %464 = vrot.lane.b32.xlu0 %v462, 32
    %v465 = vpop.permute.xlu0 %464
    %v466 = vsel %vm86, %v465, 0
    %468 = vmatpush.msra.mxu0 0.0
    %469 = vmatpush.msra.mxu0 0.0
    %470 = vmatpush.msra.mxu0 0.0
    %471 = vmatpush.msra.mxu0 0.0
    %472 = vmatpush.msra.mxu0 0.0
    %473 = vmatpush.msra.mxu0 0.0
    %474 = vmatpush.msra.mxu0 0.0
    %475 = vmatpush.msra.mxu0 0.0
    %476 = vmatpush.msra.mxu0 0.0
    %477 = vmatpush.msra.mxu0 0.0
    %478 = vmatpush.msra.mxu0 0.0
    %479 = vmatpush.msra.mxu0 0.0
    %480 = vmatpush.msra.mxu0 %v38
    %481 = vmatpush.msra.mxu0 %v37
    %482 = vmatpush.msra.mxu0 %v36
    %483 = vmatpush.msra.mxu0 %v35
    %484 = vmatmul.f32.gmra.mxu0 %v466
    %v485 = vpop.f32.mrf.mxu0
    %v486 = vadd.f32 %v41, %v485
    %487 = vdwg.mxu0
    %v488 = vld [vmem:[%s0 + $0x18] sm:$0xff]
    %v489 = vadd.f32 %v488, %v403
    %v490 = vxor.u32 %v489, 2147483648
    %v491 = vmul.f32 %v490, 1.442695
    %v492 = vpow.pop %v491
    %v493 = vadd.f32 %v492, 1.0
    %v494 = vrcp.pop %v493
    %v495 = vmul.f32 %v493, %v494
    %v496 = vsub.f32 1.0, %v495
    %v497 = vmul.f32 %v494, %v496
    %v498 = vadd.f32 %v494, %v497
    %vm499 = vweird.f32 %v493
    %vm500 = vweird.f32 %v494
    %vm501 = vmor %vm499, %vm500
    %v502 = vsel %vm501, %v494, %v498
    %v503 = vand.u32 2147483647, %v493
    %vm504 = vcmp.eq.f32.partialorder %v503, 8.507059e+37
    %v505 = vand.u32 %v493, 2147483648
    %v506 = vor.u32 1.1754944e-38, %v505
    %v507 = vsel %vm504, %v506, %v502
    %v508 = vmul.f32 1.0, %v507
    %v509 = vmul.f32 %v508, 2.0
    %v510 = vsub.f32 %v509, 1.0
    %v511 = vmul.f32 %v508, %v373
    %513 = vrot.lane.b32.xlu0 %v510, 64
    %v514 = vpop.permute.xlu0 %513
    %v516 = vmul.f32 %v508, %v514
    %518 = vrot.lane.b32.xlu0 %v516, 32
    %v519 = vpop.permute.xlu0 %518
    %v521 = vadd.f32 %v511, %v519
    %v522 = vtanh.pop %v521
    %524 = vrot.lane.b32.xlu0 %v522, 64
    %v525 = vpop.permute.xlu0 %524
    %v527 = vmul.f32 %v508, %v525
    %529 = vrot.lane.b32.xlu0 %v527, 32
    %v530 = vpop.permute.xlu0 %529
    %v531 = vsel %vm86, %v530, 0
    %533 = vmatpush.msra.mxu0 0.0
    %534 = vmatpush.msra.mxu0 0.0
    %535 = vmatpush.msra.mxu0 0.0
    %536 = vmatpush.msra.mxu0 0.0
    %537 = vmatpush.msra.mxu0 0.0
    %538 = vmatpush.msra.mxu0 0.0
    %539 = vmatpush.msra.mxu0 0.0
    %540 = vmatpush.msra.mxu0 0.0
    %541 = vmatpush.msra.mxu0 0.0
    %542 = vmatpush.msra.mxu0 0.0
    %543 = vmatpush.msra.mxu0 0.0
    %544 = vmatpush.msra.mxu0 0.0
    %545 = vmatpush.msra.mxu0 %v30
    %546 = vmatpush.msra.mxu0 %v29
    %547 = vmatpush.msra.mxu0 %v28
    %548 = vmatpush.msra.mxu0 %v27
    %549 = vmatmul.f32.gmra.mxu0 %v531
    %v550 = vpop.f32.mrf.mxu0
    %v551 = vadd.f32 0.0, %v550
    %552 = vdwg.mxu0
    %553 = vmatpush.msra.mxu0 0.0
    %554 = vmatpush.msra.mxu0 0.0
    %555 = vmatpush.msra.mxu0 0.0
    %556 = vmatpush.msra.mxu0 0.0
    %557 = vmatpush.msra.mxu0 0.0
    %558 = vmatpush.msra.mxu0 0.0
    %559 = vmatpush.msra.mxu0 0.0
    %560 = vmatpush.msra.mxu0 0.0
    %561 = vmatpush.msra.mxu0 0.0
    %562 = vmatpush.msra.mxu0 0.0
    %563 = vmatpush.msra.mxu0 0.0
    %564 = vmatpush.msra.mxu0 0.0
    %565 = vmatpush.msra.mxu0 %v34
    %566 = vmatpush.msra.mxu0 %v33
    %567 = vmatpush.msra.mxu0 %v32
    %568 = vmatpush.msra.mxu0 %v31
    %569 = vmatmul.f32.gmra.mxu0 %v531
    %v570 = vpop.f32.mrf.mxu0
    %v571 = vadd.f32 %v486, %v570
    %572 = vdwg.mxu0
    %v573 = vxor.u32 %v571, 2147483648
    %v574 = vmul.f32 %v573, 1.442695
    %v575 = vpow.pop %v574
    %v576 = vadd.f32 %v575, 1.0
    %v577 = vrcp.pop %v576
    %v578 = vmul.f32 %v576, %v577
    %v579 = vsub.f32 1.0, %v578
    %v580 = vmul.f32 %v577, %v579
    %v581 = vadd.f32 %v577, %v580
    %vm582 = vweird.f32 %v576
    %vm583 = vweird.f32 %v577
    %vm584 = vmor %vm582, %vm583
    %v585 = vsel %vm584, %v577, %v581
    %v586 = vand.u32 2147483647, %v576
    %vm587 = vcmp.eq.f32.partialorder %v586, 8.507059e+37
    %v588 = vand.u32 %v576, 2147483648
    %v589 = vor.u32 1.1754944e-38, %v588
    %v590 = vsel %vm587, %v589, %v585
    %v591 = vmul.f32 1.0, %v590
    %v592 = vmul.f32 %v591, 2.0
    %v593 = vsub.f32 %v592, 1.0
    %v594 = vmul.f32 %v591, %v456
    %596 = vrot.lane.b32.xlu0 %v593, 64
    %v597 = vpop.permute.xlu0 %596
    %v599 = vmul.f32 %v591, %v597
    %601 = vrot.lane.b32.xlu0 %v599, 32
    %v602 = vpop.permute.xlu0 %601
    %v604 = vadd.f32 %v594, %v602
    %v605 = vtanh.pop %v604
    %607 = vrot.lane.b32.xlu0 %v605, 64
    %v608 = vpop.permute.xlu0 %607
    %v610 = vmul.f32 %v591, %v608
    %612 = vrot.lane.b32.xlu0 %v610, 32
    %v613 = vpop.permute.xlu0 %612
    %v614 = vsel %vm86, %v613, 0
    %616 = vmatpush.msra.mxu0 0.0
    %617 = vmatpush.msra.mxu0 0.0
    %618 = vmatpush.msra.mxu0 0.0
    %619 = vmatpush.msra.mxu0 0.0
    %620 = vmatpush.msra.mxu0 0.0
    %621 = vmatpush.msra.mxu0 0.0
    %622 = vmatpush.msra.mxu0 0.0
    %623 = vmatpush.msra.mxu0 0.0
    %624 = vmatpush.msra.mxu0 0.0
    %625 = vmatpush.msra.mxu0 0.0
    %626 = vmatpush.msra.mxu0 0.0
    %627 = vmatpush.msra.mxu0 0.0
    %628 = vmatpush.msra.mxu0 %v38
    %629 = vmatpush.msra.mxu0 %v37
    %630 = vmatpush.msra.mxu0 %v36
    %631 = vmatpush.msra.mxu0 %v35
    %632 = vmatmul.f32.gmra.mxu0 %v614
    %v633 = vpop.f32.mrf.mxu0
    %v634 = vadd.f32 %v41, %v633
    %635 = vdwg.mxu0
    %v636 = vld [vmem:[%s0 + $0x20] sm:$0xff]
    %v637 = vadd.f32 %v636, %v551
    %v638 = vxor.u32 %v637, 2147483648
    %v639 = vmul.f32 %v638, 1.442695
    %v640 = vpow.pop %v639
    %v641 = vadd.f32 %v640, 1.0
    %v642 = vrcp.pop %v641
    %v643 = vmul.f32 %v641, %v642
    %v644 = vsub.f32 1.0, %v643
    %v645 = vmul.f32 %v642, %v644
    %v646 = vadd.f32 %v642, %v645
    %vm647 = vweird.f32 %v641
    %vm648 = vweird.f32 %v642
    %vm649 = vmor %vm647, %vm648
    %v650 = vsel %vm649, %v642, %v646
    %v651 = vand.u32 2147483647, %v641
    %vm652 = vcmp.eq.f32.partialorder %v651, 8.507059e+37
    %v653 = vand.u32 %v641, 2147483648
    %v654 = vor.u32 1.1754944e-38, %v653
    %v655 = vsel %vm652, %v654, %v650
    %v656 = vmul.f32 1.0, %v655
    %v657 = vmul.f32 %v656, 2.0
    %v658 = vsub.f32 %v657, 1.0
    %v659 = vmul.f32 %v656, %v521
    %661 = vrot.lane.b32.xlu0 %v658, 64
    %v662 = vpop.permute.xlu0 %661
    %v664 = vmul.f32 %v656, %v662
    %666 = vrot.lane.b32.xlu0 %v664, 32
    %v667 = vpop.permute.xlu0 %666
    %v669 = vadd.f32 %v659, %v667
    %v670 = vtanh.pop %v669
    %672 = vrot.lane.b32.xlu0 %v670, 64
    %v673 = vpop.permute.xlu0 %672
    %v675 = vmul.f32 %v656, %v673
    %677 = vrot.lane.b32.xlu0 %v675, 32
    %v678 = vpop.permute.xlu0 %677
    %v679 = vsel %vm86, %v678, 0
    %681 = vmatpush.msra.mxu0 0.0
    %682 = vmatpush.msra.mxu0 0.0
    %683 = vmatpush.msra.mxu0 0.0
    %684 = vmatpush.msra.mxu0 0.0
    %685 = vmatpush.msra.mxu0 0.0
    %686 = vmatpush.msra.mxu0 0.0
    %687 = vmatpush.msra.mxu0 0.0
    %688 = vmatpush.msra.mxu0 0.0
    %689 = vmatpush.msra.mxu0 0.0
    %690 = vmatpush.msra.mxu0 0.0
    %691 = vmatpush.msra.mxu0 0.0
    %692 = vmatpush.msra.mxu0 0.0
    %693 = vmatpush.msra.mxu0 %v30
    %694 = vmatpush.msra.mxu0 %v29
    %695 = vmatpush.msra.mxu0 %v28
    %696 = vmatpush.msra.mxu0 %v27
    %697 = vmatmul.f32.gmra.mxu0 %v679
    %v698 = vpop.f32.mrf.mxu0
    %v699 = vadd.f32 0.0, %v698
    %700 = vdwg.mxu0
    %701 = vmatpush.msra.mxu0 0.0
    %702 = vmatpush.msra.mxu0 0.0
    %703 = vmatpush.msra.mxu0 0.0
    %704 = vmatpush.msra.mxu0 0.0
    %705 = vmatpush.msra.mxu0 0.0
    %706 = vmatpush.msra.mxu0 0.0
    %707 = vmatpush.msra.mxu0 0.0
    %708 = vmatpush.msra.mxu0 0.0
    %709 = vmatpush.msra.mxu0 0.0
    %710 = vmatpush.msra.mxu0 0.0
    %711 = vmatpush.msra.mxu0 0.0
    %712 = vmatpush.msra.mxu0 0.0
    %713 = vmatpush.msra.mxu0 %v34
    %714 = vmatpush.msra.mxu0 %v33
    %715 = vmatpush.msra.mxu0 %v32
    %716 = vmatpush.msra.mxu0 %v31
    %717 = vmatmul.f32.gmra.mxu0 %v679
    %v718 = vpop.f32.mrf.mxu0
    %v719 = vadd.f32 %v634, %v718
    %720 = vdwg.mxu0
    %v721 = vxor.u32 %v719, 2147483648
    %v722 = vmul.f32 %v721, 1.442695
    %v723 = vpow.pop %v722
    %v724 = vadd.f32 %v723, 1.0
    %v725 = vrcp.pop %v724
    %v726 = vmul.f32 %v724, %v725
    %v727 = vsub.f32 1.0, %v726
    %v728 = vmul.f32 %v725, %v727
    %v729 = vadd.f32 %v725, %v728
    %vm730 = vweird.f32 %v724
    %vm731 = vweird.f32 %v725
    %vm732 = vmor %vm730, %vm731
    %v733 = vsel %vm732, %v725, %v729
    %v734 = vand.u32 2147483647, %v724
    %vm735 = vcmp.eq.f32.partialorder %v734, 8.507059e+37
    %v736 = vand.u32 %v724, 2147483648
    %v737 = vor.u32 1.1754944e-38, %v736
    %v738 = vsel %vm735, %v737, %v733
    %v739 = vmul.f32 1.0, %v738
    %v740 = vmul.f32 %v739, 2.0
    %v741 = vsub.f32 %v740, 1.0
    %v742 = vmul.f32 %v739, %v604
    %744 = vrot.lane.b32.xlu0 %v741, 64
    %v745 = vpop.permute.xlu0 %744
    %v747 = vmul.f32 %v739, %v745
    %749 = vrot.lane.b32.xlu0 %v747, 32
    %v750 = vpop.permute.xlu0 %749
    %v752 = vadd.f32 %v742, %v750
    %v753 = vtanh.pop %v752
    %755 = vrot.lane.b32.xlu0 %v753, 64
    %v756 = vpop.permute.xlu0 %755
    %v758 = vmul.f32 %v739, %v756
    %760 = vrot.lane.b32.xlu0 %v758, 32
    %v761 = vpop.permute.xlu0 %760
    %v762 = vsel %vm86, %v761, 0
    %764 = vmatpush.msra.mxu0 0.0
    %765 = vmatpush.msra.mxu0 0.0
    %766 = vmatpush.msra.mxu0 0.0
    %767 = vmatpush.msra.mxu0 0.0
    %768 = vmatpush.msra.mxu0 0.0
    %769 = vmatpush.msra.mxu0 0.0
    %770 = vmatpush.msra.mxu0 0.0
    %771 = vmatpush.msra.mxu0 0.0
    %772 = vmatpush.msra.mxu0 0.0
    %773 = vmatpush.msra.mxu0 0.0
    %774 = vmatpush.msra.mxu0 0.0
    %775 = vmatpush.msra.mxu0 0.0
    %776 = vmatpush.msra.mxu0 %v38
    %777 = vmatpush.msra.mxu0 %v37
    %778 = vmatpush.msra.mxu0 %v36
    %779 = vmatpush.msra.mxu0 %v35
    %780 = vmatmul.f32.gmra.mxu0 %v762
    %v781 = vpop.f32.mrf.mxu0
    %v782 = vadd.f32 %v41, %v781
    %783 = vdwg.mxu0
    %v784 = vld [vmem:[%s0 + $0x28] sm:$0xff]
    %v785 = vadd.f32 %v784, %v699
    %v786 = vxor.u32 %v785, 2147483648
    %v787 = vmul.f32 %v786, 1.442695
    %v788 = vpow.pop %v787
    %v789 = vadd.f32 %v788, 1.0
    %v790 = vrcp.pop %v789
    %v791 = vmul.f32 %v789, %v790
    %v792 = vsub.f32 1.0, %v791
    %v793 = vmul.f32 %v790, %v792
    %v794 = vadd.f32 %v790, %v793
    %vm795 = vweird.f32 %v789
    %vm796 = vweird.f32 %v790
    %vm797 = vmor %vm795, %vm796
    %v798 = vsel %vm797, %v790, %v794
    %v799 = vand.u32 2147483647, %v789
    %vm800 = vcmp.eq.f32.partialorder %v799, 8.507059e+37
    %v801 = vand.u32 %v789, 2147483648
    %v802 = vor.u32 1.1754944e-38, %v801
    %v803 = vsel %vm800, %v802, %v798
    %v804 = vmul.f32 1.0, %v803
    %v805 = vmul.f32 %v804, 2.0
    %v806 = vsub.f32 %v805, 1.0
    %v807 = vmul.f32 %v804, %v669
    %809 = vrot.lane.b32.xlu0 %v806, 64
    %v810 = vpop.permute.xlu0 %809
    %v812 = vmul.f32 %v804, %v810
    %814 = vrot.lane.b32.xlu0 %v812, 32
    %v815 = vpop.permute.xlu0 %814
    %v817 = vadd.f32 %v807, %v815
    %v818 = vtanh.pop %v817
    %820 = vrot.lane.b32.xlu0 %v818, 64
    %v821 = vpop.permute.xlu0 %820
    %v823 = vmul.f32 %v804, %v821
    %825 = vrot.lane.b32.xlu0 %v823, 32
    %v826 = vpop.permute.xlu0 %825
    %v827 = vsel %vm86, %v826, 0
    %829 = vmatpush.msra.mxu0 0.0
    %830 = vmatpush.msra.mxu0 0.0
    %831 = vmatpush.msra.mxu0 0.0
    %832 = vmatpush.msra.mxu0 0.0
    %833 = vmatpush.msra.mxu0 0.0
    %834 = vmatpush.msra.mxu0 0.0
    %835 = vmatpush.msra.mxu0 0.0
    %836 = vmatpush.msra.mxu0 0.0
    %837 = vmatpush.msra.mxu0 0.0
    %838 = vmatpush.msra.mxu0 0.0
    %839 = vmatpush.msra.mxu0 0.0
    %840 = vmatpush.msra.mxu0 0.0
    %841 = vmatpush.msra.mxu0 %v30
    %842 = vmatpush.msra.mxu0 %v29
    %843 = vmatpush.msra.mxu0 %v28
    %844 = vmatpush.msra.mxu0 %v27
    %845 = vmatmul.f32.gmra.mxu0 %v827
    %v846 = vpop.f32.mrf.mxu0
    %v847 = vadd.f32 0.0, %v846
    %848 = vdwg.mxu0
    %849 = vmatpush.msra.mxu0 0.0
    %850 = vmatpush.msra.mxu0 0.0
    %851 = vmatpush.msra.mxu0 0.0
    %852 = vmatpush.msra.mxu0 0.0
    %853 = vmatpush.msra.mxu0 0.0
    %854 = vmatpush.msra.mxu0 0.0
    %855 = vmatpush.msra.mxu0 0.0
    %856 = vmatpush.msra.mxu0 0.0
    %857 = vmatpush.msra.mxu0 0.0
    %858 = vmatpush.msra.mxu0 0.0
    %859 = vmatpush.msra.mxu0 0.0
    %860 = vmatpush.msra.mxu0 0.0
    %861 = vmatpush.msra.mxu0 %v34
    %862 = vmatpush.msra.mxu0 %v33
    %863 = vmatpush.msra.mxu0 %v32
    %864 = vmatpush.msra.mxu0 %v31
    %865 = vmatmul.f32.gmra.mxu0 %v827
    %v866 = vpop.f32.mrf.mxu0
    %v867 = vadd.f32 %v782, %v866
    %868 = vdwg.mxu0
    %v869 = vxor.u32 %v867, 2147483648
    %v870 = vmul.f32 %v869, 1.442695
    %v871 = vpow.pop %v870
    %v872 = vadd.f32 %v871, 1.0
    %v873 = vrcp.pop %v872
    %v874 = vmul.f32 %v872, %v873
    %v875 = vsub.f32 1.0, %v874
    %v876 = vmul.f32 %v873, %v875
    %v877 = vadd.f32 %v873, %v876
    %vm878 = vweird.f32 %v872
    %vm879 = vweird.f32 %v873
    %vm880 = vmor %vm878, %vm879
    %v881 = vsel %vm880, %v873, %v877
    %v882 = vand.u32 2147483647, %v872
    %vm883 = vcmp.eq.f32.partialorder %v882, 8.507059e+37
    %v884 = vand.u32 %v872, 2147483648
    %v885 = vor.u32 1.1754944e-38, %v884
    %v886 = vsel %vm883, %v885, %v881
    %v887 = vmul.f32 1.0, %v886
    %v888 = vmul.f32 %v887, 2.0
    %v889 = vsub.f32 %v888, 1.0
    %v890 = vmul.f32 %v887, %v752
    %892 = vrot.lane.b32.xlu0 %v889, 64
    %v893 = vpop.permute.xlu0 %892
    %v895 = vmul.f32 %v887, %v893
    %897 = vrot.lane.b32.xlu0 %v895, 32
    %v898 = vpop.permute.xlu0 %897
    %v900 = vadd.f32 %v890, %v898
    %v901 = vtanh.pop %v900
    %903 = vrot.lane.b32.xlu0 %v901, 64
    %v904 = vpop.permute.xlu0 %903
    %v906 = vmul.f32 %v887, %v904
    %908 = vrot.lane.b32.xlu0 %v906, 32
    %v909 = vpop.permute.xlu0 %908
    %v910 = vsel %vm86, %v909, 0
    %912 = vmatpush.msra.mxu0 0.0
    %913 = vmatpush.msra.mxu0 0.0
    %914 = vmatpush.msra.mxu0 0.0
    %915 = vmatpush.msra.mxu0 0.0
    %916 = vmatpush.msra.mxu0 0.0
    %917 = vmatpush.msra.mxu0 0.0
    %918 = vmatpush.msra.mxu0 0.0
    %919 = vmatpush.msra.mxu0 0.0
    %920 = vmatpush.msra.mxu0 0.0
    %921 = vmatpush.msra.mxu0 0.0
    %922 = vmatpush.msra.mxu0 0.0
    %923 = vmatpush.msra.mxu0 0.0
    %924 = vmatpush.msra.mxu0 %v38
    %925 = vmatpush.msra.mxu0 %v37
    %926 = vmatpush.msra.mxu0 %v36
    %927 = vmatpush.msra.mxu0 %v35
    %928 = vmatmul.f32.gmra.mxu0 %v910
    %v929 = vpop.f32.mrf.mxu0
    %v930 = vadd.f32 %v41, %v929
    %931 = vdwg.mxu0
    %v932 = vld [vmem:[%s0 + $0x30] sm:$0xff]
    %v933 = vadd.f32 %v932, %v847
    %v934 = vxor.u32 %v933, 2147483648
    %v935 = vmul.f32 %v934, 1.442695
    %v936 = vpow.pop %v935
    %v937 = vadd.f32 %v936, 1.0
    %v938 = vrcp.pop %v937
    %v939 = vmul.f32 %v937, %v938
    %v940 = vsub.f32 1.0, %v939
    %v941 = vmul.f32 %v938, %v940
    %v942 = vadd.f32 %v938, %v941
    %vm943 = vweird.f32 %v937
    %vm944 = vweird.f32 %v938
    %vm945 = vmor %vm943, %vm944
    %v946 = vsel %vm945, %v938, %v942
    %v947 = vand.u32 2147483647, %v937
    %vm948 = vcmp.eq.f32.partialorder %v947, 8.507059e+37
    %v949 = vand.u32 %v937, 2147483648
    %v950 = vor.u32 1.1754944e-38, %v949
    %v951 = vsel %vm948, %v950, %v946
    %v952 = vmul.f32 1.0, %v951
    %v953 = vmul.f32 %v952, 2.0
    %v954 = vsub.f32 %v953, 1.0
    %v955 = vmul.f32 %v952, %v817
    %957 = vrot.lane.b32.xlu0 %v954, 64
    %v958 = vpop.permute.xlu0 %957
    %v960 = vmul.f32 %v952, %v958
    %962 = vrot.lane.b32.xlu0 %v960, 32
    %v963 = vpop.permute.xlu0 %962
    %v965 = vadd.f32 %v955, %v963
    %v966 = vtanh.pop %v965
    %968 = vrot.lane.b32.xlu0 %v966, 64
    %v969 = vpop.permute.xlu0 %968
    %v971 = vmul.f32 %v952, %v969
    %973 = vrot.lane.b32.xlu0 %v971, 32
    %v974 = vpop.permute.xlu0 %973
    %v975 = vsel %vm86, %v974, 0
    %977 = vmatpush.msra.mxu0 0.0
    %978 = vmatpush.msra.mxu0 0.0
    %979 = vmatpush.msra.mxu0 0.0
    %980 = vmatpush.msra.mxu0 0.0
    %981 = vmatpush.msra.mxu0 0.0
    %982 = vmatpush.msra.mxu0 0.0
    %983 = vmatpush.msra.mxu0 0.0
    %984 = vmatpush.msra.mxu0 0.0
    %985 = vmatpush.msra.mxu0 0.0
    %986 = vmatpush.msra.mxu0 0.0
    %987 = vmatpush.msra.mxu0 0.0
    %988 = vmatpush.msra.mxu0 0.0
    %989 = vmatpush.msra.mxu0 %v30
    %990 = vmatpush.msra.mxu0 %v29
    %991 = vmatpush.msra.mxu0 %v28
    %992 = vmatpush.msra.mxu0 %v27
    %993 = vmatmul.f32.gmra.mxu0 %v975
    %v994 = vpop.f32.mrf.mxu0
    %v995 = vadd.f32 0.0, %v994
    %996 = vdwg.mxu0
    %997 = vmatpush.msra.mxu0 0.0
    %998 = vmatpush.msra.mxu0 0.0
    %999 = vmatpush.msra.mxu0 0.0
    %1000 = vmatpush.msra.mxu0 0.0
    %1001 = vmatpush.msra.mxu0 0.0
    %1002 = vmatpush.msra.mxu0 0.0
    %1003 = vmatpush.msra.mxu0 0.0
    %1004 = vmatpush.msra.mxu0 0.0
    %1005 = vmatpush.msra.mxu0 0.0
    %1006 = vmatpush.msra.mxu0 0.0
    %1007 = vmatpush.msra.mxu0 0.0
    %1008 = vmatpush.msra.mxu0 0.0
    %1009 = vmatpush.msra.mxu0 %v34
    %1010 = vmatpush.msra.mxu0 %v33
    %1011 = vmatpush.msra.mxu0 %v32
    %1012 = vmatpush.msra.mxu0 %v31
    %1013 = vmatmul.f32.gmra.mxu0 %v975
    %v1014 = vpop.f32.mrf.mxu0
    %v1015 = vadd.f32 %v930, %v1014
    %1016 = vdwg.mxu0
    %v1017 = vxor.u32 %v1015, 2147483648
    %v1018 = vmul.f32 %v1017, 1.442695
    %v1019 = vpow.pop %v1018
    %v1020 = vadd.f32 %v1019, 1.0
    %v1021 = vrcp.pop %v1020
    %v1022 = vmul.f32 %v1020, %v1021
    %v1023 = vsub.f32 1.0, %v1022
    %v1024 = vmul.f32 %v1021, %v1023
    %v1025 = vadd.f32 %v1021, %v1024
    %vm1026 = vweird.f32 %v1020
    %vm1027 = vweird.f32 %v1021
    %vm1028 = vmor %vm1026, %vm1027
    %v1029 = vsel %vm1028, %v1021, %v1025
    %v1030 = vand.u32 2147483647, %v1020
    %vm1031 = vcmp.eq.f32.partialorder %v1030, 8.507059e+37
    %v1032 = vand.u32 %v1020, 2147483648
    %v1033 = vor.u32 1.1754944e-38, %v1032
    %v1034 = vsel %vm1031, %v1033, %v1029
    %v1035 = vmul.f32 1.0, %v1034
    %v1036 = vmul.f32 %v1035, 2.0
    %v1037 = vsub.f32 %v1036, 1.0
    %v1038 = vmul.f32 %v1035, %v900
    %1040 = vrot.lane.b32.xlu0 %v1037, 64
    %v1041 = vpop.permute.xlu0 %1040
    %v1043 = vmul.f32 %v1035, %v1041
    %1045 = vrot.lane.b32.xlu0 %v1043, 32
    %v1046 = vpop.permute.xlu0 %1045
    %v1048 = vadd.f32 %v1038, %v1046
    %v1049 = vtanh.pop %v1048
    %1051 = vrot.lane.b32.xlu0 %v1049, 64
    %v1052 = vpop.permute.xlu0 %1051
    %v1054 = vmul.f32 %v1035, %v1052
    %1056 = vrot.lane.b32.xlu0 %v1054, 32
    %v1057 = vpop.permute.xlu0 %1056
    %v1058 = vsel %vm86, %v1057, 0
    %1060 = vmatpush.msra.mxu0 0.0
    %1061 = vmatpush.msra.mxu0 0.0
    %1062 = vmatpush.msra.mxu0 0.0
    %1063 = vmatpush.msra.mxu0 0.0
    %1064 = vmatpush.msra.mxu0 0.0
    %1065 = vmatpush.msra.mxu0 0.0
    %1066 = vmatpush.msra.mxu0 0.0
    %1067 = vmatpush.msra.mxu0 0.0
    %1068 = vmatpush.msra.mxu0 0.0
    %1069 = vmatpush.msra.mxu0 0.0
    %1070 = vmatpush.msra.mxu0 0.0
    %1071 = vmatpush.msra.mxu0 0.0
    %1072 = vmatpush.msra.mxu0 %v38
    %1073 = vmatpush.msra.mxu0 %v37
    %1074 = vmatpush.msra.mxu0 %v36
    %1075 = vmatpush.msra.mxu0 %v35
    %1076 = vmatmul.f32.gmra.mxu0 %v1058
    %v1077 = vpop.f32.mrf.mxu0
    %v1078 = vadd.f32 %v41, %v1077
    %1079 = vdwg.mxu0
    %v1080 = vld [vmem:[%s0 + $0x38] sm:$0xff]
    %v1081 = vadd.f32 %v1080, %v995
    %v1082 = vxor.u32 %v1081, 2147483648
    %v1083 = vmul.f32 %v1082, 1.442695
    %v1084 = vpow.pop %v1083
    %v1085 = vadd.f32 %v1084, 1.0
    %v1086 = vrcp.pop %v1085
    %v1087 = vmul.f32 %v1085, %v1086
    %v1088 = vsub.f32 1.0, %v1087
    %v1089 = vmul.f32 %v1086, %v1088
    %v1090 = vadd.f32 %v1086, %v1089
    %vm1091 = vweird.f32 %v1085
    %vm1092 = vweird.f32 %v1086
    %vm1093 = vmor %vm1091, %vm1092
    %v1094 = vsel %vm1093, %v1086, %v1090
    %v1095 = vand.u32 2147483647, %v1085
    %vm1096 = vcmp.eq.f32.partialorder %v1095, 8.507059e+37
    %v1097 = vand.u32 %v1085, 2147483648
    %v1098 = vor.u32 1.1754944e-38, %v1097
    %v1099 = vsel %vm1096, %v1098, %v1094
    %v1100 = vmul.f32 1.0, %v1099
    %v1101 = vmul.f32 %v1100, 2.0
    %v1102 = vsub.f32 %v1101, 1.0
    %v1103 = vmul.f32 %v1100, %v965
    %1105 = vrot.lane.b32.xlu0 %v1102, 64
    %v1106 = vpop.permute.xlu0 %1105
    %v1108 = vmul.f32 %v1100, %v1106
    %1110 = vrot.lane.b32.xlu0 %v1108, 32
    %v1111 = vpop.permute.xlu0 %1110
    %v1113 = vadd.f32 %v1103, %v1111
    %v1114 = vtanh.pop %v1113
    %1116 = vrot.lane.b32.xlu0 %v1114, 64
    %v1117 = vpop.permute.xlu0 %1116
    %v1119 = vmul.f32 %v1100, %v1117
    %1121 = vrot.lane.b32.xlu0 %v1119, 32
    %v1122 = vpop.permute.xlu0 %1121
    %v1123 = vsel %vm86, %v1122, 0
    %1125 = vmatpush.msra.mxu0 0.0
    %1126 = vmatpush.msra.mxu0 0.0
    %1127 = vmatpush.msra.mxu0 0.0
    %1128 = vmatpush.msra.mxu0 0.0
    %1129 = vmatpush.msra.mxu0 0.0
    %1130 = vmatpush.msra.mxu0 0.0
    %1131 = vmatpush.msra.mxu0 0.0
    %1132 = vmatpush.msra.mxu0 0.0
    %1133 = vmatpush.msra.mxu0 0.0
    %1134 = vmatpush.msra.mxu0 0.0
    %1135 = vmatpush.msra.mxu0 0.0
    %1136 = vmatpush.msra.mxu0 0.0
    %1137 = vmatpush.msra.mxu0 %v34
    %1138 = vmatpush.msra.mxu0 %v33
    %1139 = vmatpush.msra.mxu0 %v32
    %1140 = vmatpush.msra.mxu0 %v31
    %1141 = vmatmul.f32.gmra.mxu0 %v1123
    %v1142 = vpop.f32.mrf.mxu0
    %v1143 = vadd.f32 %v1078, %v1142
    %1144 = vdwg.mxu0
    %v1145 = vxor.u32 %v1143, 2147483648
    %v1146 = vmul.f32 %v1145, 1.442695
    %v1147 = vpow.pop %v1146
    %v1148 = vadd.f32 %v1147, 1.0
    %v1149 = vrcp.pop %v1148
    %v1150 = vmul.f32 %v1148, %v1149
    %v1151 = vsub.f32 1.0, %v1150
    %v1152 = vmul.f32 %v1149, %v1151
    %v1153 = vadd.f32 %v1149, %v1152
    %vm1154 = vweird.f32 %v1148
    %vm1155 = vweird.f32 %v1149
    %vm1156 = vmor %vm1154, %vm1155
    %v1157 = vsel %vm1156, %v1149, %v1153
    %v1158 = vand.u32 2147483647, %v1148
    %vm1159 = vcmp.eq.f32.partialorder %v1158, 8.507059e+37
    %v1160 = vand.u32 %v1148, 2147483648
    %v1161 = vor.u32 1.1754944e-38, %v1160
    %v1162 = vsel %vm1159, %v1161, %v1157
    %v1163 = vmul.f32 1.0, %v1162
    %v1164 = vmul.f32 %v1163, 2.0
    %v1165 = vsub.f32 %v1164, 1.0
    %v1166 = vmul.f32 %v1163, %v1048
    %1168 = vrot.lane.b32.xlu0 %v1165, 64
    %v1169 = vpop.permute.xlu0 %1168
    %v1171 = vmul.f32 %v1163, %v1169
    %1173 = vrot.lane.b32.xlu0 %v1171, 32
    %v1174 = vpop.permute.xlu0 %1173
    %v1176 = vadd.f32 %v1166, %v1174
    %v1177 = vtanh.pop %v1176
    %1179 = vrot.lane.b32.xlu0 %v1177, 64
    %v1180 = vpop.permute.xlu0 %1179
    %v1182 = vmul.f32 %v1163, %v1180
    %v1183 = vld [vmem:[%s5] sm:$0xff]
    %v1184 = vld [vmem:[%s5 + $0x8] sm:$0xff]
    %v1185 = vld [vmem:[%s5 + $0x10] sm:$0xff]
    %v1186 = vld [vmem:[%s5 + $0x18] sm:$0xff]
    %v1187 = vld [vmem:[%s6] sm:$0x1]
    %v1189 = vperm.slane %v1187, 0
    %1192 = vrot.lane.b32.xlu0 %v1182, 32
    %v1193 = vpop.permute.xlu0 %1192
    %v1194 = vsel %vm86, %v1193, 0
    %1196 = vmatpush.msra.mxu0 0.0
    %1197 = vmatpush.msra.mxu0 0.0
    %1198 = vmatpush.msra.mxu0 0.0
    %1199 = vmatpush.msra.mxu0 0.0
    %1200 = vmatpush.msra.mxu0 0.0
    %1201 = vmatpush.msra.mxu0 0.0
    %1202 = vmatpush.msra.mxu0 0.0
    %1203 = vmatpush.msra.mxu0 0.0
    %1204 = vmatpush.msra.mxu0 0.0
    %1205 = vmatpush.msra.mxu0 0.0
    %1206 = vmatpush.msra.mxu0 0.0
    %1207 = vmatpush.msra.mxu0 0.0
    %1208 = vmatpush.msra.mxu0 %v1186
    %1209 = vmatpush.msra.mxu0 %v1185
    %1210 = vmatpush.msra.mxu0 %v1184
    %1211 = vmatpush.msra.mxu0 %v1183
    %1212 = vmatmul.f32.gmra.mxu0 %v1194
    %v1213 = vpop.f32.mrf.mxu0
    %v1214 = vadd.f32 %v1189, %v1213
    %1215 = vdwg.mxu0
    %1216 = vst.msk [vmem:[#allocation2] sm:$0xff] %vm86, %v1214
    // Predicated region
    $region30: #{deeplog_forward.1} parent=1 // pred_check
      _
    $region31: #{deeplog_forward.1} parent=1 // pred_check_branch
      %1218 = sbr.rel (0) target = $region33
    $region32: #{deeplog_forward.1} parent=1 // pred_region
      %1220 = vsyncadd [#allocation3], 0
      %s1222 = sshll.u32 [#allocation2], 4
      %s1223 = int_to_ptr.vmem [resolvable:$true] %s1222
      %s1224 = sshll.u32 %s7, 4
      %s1225 = int_to_ptr.hbm [resolvable:$true] %s1224
      %1227 = dma.vmem_to_hbm [thread:$0]  %s1223, 128, %s1225, [#allocation3]
    $region33: #{deeplog_forward.1} parent=1 // pred_fallthru
      _
    // Predicated region
    $region34: #{deeplog_forward.1} parent=1 // pred_check
      _
    $region35: #{deeplog_forward.1} parent=1 // pred_check_branch
      %1229 = sbr.rel (0) target = $region37
    $region36: #{deeplog_forward.1} parent=1 // pred_region
      %1231 = dma.done [#allocation3], 128
    $region37: #{deeplog_forward.1} parent=1 // pred_fallthru
      _
    %1232 = vsyncpa [#allocation3], 1

</llo_original>
